<compile_context>
chip_gen: v6e
topology: v6e:2x2x1
jax: 0.10.0
libtpu: 0.0.40
codegen_flags: <defaults>
</compile_context>

<pallas_src>
import functools

import jax
import jax.numpy as jnp
from jax.experimental import pallas as pl
from jax.experimental.pallas import tpu as pltpu

_LANE = 128


# ----------------------------------------------------------------------------
# Pallas kernels
# ----------------------------------------------------------------------------
def _xw_kernel(x_ref, w_ref, xw_ref):
    """XW = X @ W for one row tile; bf16 output for the HBM-bound A stream."""
    xw_ref[...] = jnp.dot(
        x_ref[...], w_ref[...], preferred_element_type=jnp.float32
    ).astype(xw_ref.dtype)


def _propagate_kernel(a_ref, xw_ref, b_ref, alpha_ref, z_ref, acc_ref, *, tk):
    """z = PReLU(A_hat @ XW + b), accumulated over the contraction grid axis.

    xw_ref is either the full VMEM-resident XW (sliced here per k step) or a
    per-step (tk, hp) tile, depending on the BlockSpec chosen by the wrapper.
    """
    k = pl.program_id(1)

    @pl.when(k == 0)
    def _():
        acc_ref[...] = jnp.zeros_like(acc_ref)

    if tk < xw_ref.shape[0]:
        # XW resident in VMEM: take the k-th contraction slice.
        start = pl.multiple_of(k * tk, _LANE)
        xw = xw_ref[pl.ds(start, tk), :]
    else:
        xw = xw_ref[...]

    acc_ref[...] += jnp.dot(a_ref[...], xw, preferred_element_type=jnp.float32)

    @pl.when(k == pl.num_programs(1) - 1)
    def _():
        t = acc_ref[...] + b_ref[...]                          # (tm, hp)+(1, hp)
        z_ref[...] = jnp.where(t > 0.0, t, alpha_ref[...] * t).astype(z_ref.dtype)


# ----------------------------------------------------------------------------
# Helpers: padding, generation-aware VMEM budget, tiling
# ----------------------------------------------------------------------------
def _round_up(x, m):
    return ((x + m - 1) // m) * m


def _pad2d(a, rows, cols):
    r, c = a.shape
    return jnp.pad(a, ((0, rows - r), (0, cols - c)))


def _vmem_cap_bytes():
    """Physical VMEM per TensorCore (64 MiB v7x, 128 MiB v5e/v6e)."""
    try:
        cap = int(pltpu.get_tpu_info().vmem_capacity_bytes)
        if cap > 0:
            return cap
    except Exception:
        pass
    return 64 << 20  # conservative fallback (v7x)


def _vmem_limit(working_set_bytes, cap):
    """Explicit scoped-VMEM limit: footprint + headroom, capped at physical."""
    return int(min(cap, max(32 << 20, working_set_bytes + (8 << 20))))


def _divisor_tiles(n_pad, max_tile):
    """Multiple-of-128 divisors of n_pad that are <= max_tile, descending."""
    units = n_pad // _LANE
    out = [d * _LANE for d in range(1, units + 1)
           if units % d == 0 and d * _LANE <= max_tile]
    return sorted(out, reverse=True)


def _choose_propagate_tiles(n, hp, budget):
    """Pick (n_pad, tm, tk, xw_resident) for the A_hat @ XW pass."""
    n_pad = _round_up(n, _LANE)
    if n_pad <= 1024:
        # Small graph: single tile over rows and contraction.
        return n_pad, n_pad, n_pad, True

    # Row tile: largest 128-multiple divisor of n_pad <= 640, keeping >= 2 row
    # tiles so the 'parallel' axis can shard across TensorCores (v7x megacore).
    tm_cands = [t for t in _divisor_tiles(n_pad, 640) if t < n_pad]
    tm = tm_cands[0] if tm_cands else _LANE
    if tm < 256:
        # Awkward N (e.g. prime multiple of 128): re-pad to a multiple of 512.
        n_pad = _round_up(n, 512)
        tm = 512

    def fits(tk, resident):
        a_bytes = 2 * tm * tk * 2                              # bf16, 2 buffers
        xw_bytes = 2 * (n_pad if resident else tk) * hp * 2    # bf16
        out_bytes = 2 * tm * hp * 4
        acc_bytes = tm * hp * 4
        return a_bytes + xw_bytes + out_bytes + acc_bytes + (2 << 20) <= budget

    # Prefer keeping the whole XW VMEM-resident (fetched once) if it leaves
    # room for at least a modest full-row A tile.
    resident = fits(1024, True)
    tk = None
    for cand in _divisor_tiles(n_pad, n_pad):                  # descending
        if fits(cand, resident):
            tk = cand
            break
    if tk is None:
        resident = False
        for cand in _divisor_tiles(n_pad, n_pad):
            if fits(cand, resident):
                tk = cand
                break
        if tk is None:
            tk = _LANE
    return n_pad, tm, tk, resident


def _choose_xw_tile(n_pad, fp, hp, budget):
    """Row tile for XW = z @ W (W fully resident)."""
    if n_pad <= 1024:
        return n_pad
    target = max(1024, n_pad // 8)       # a handful of steps: overlap + megacore
    for tmx in _divisor_tiles(n_pad, target):
        foot = 2 * tmx * fp * 2 + 2 * fp * hp * 2 + 2 * tmx * hp * 2 + (2 << 20)
        if foot <= budget:
            return tmx
    return _LANE


# ----------------------------------------------------------------------------
# One GCN layer on padded operands
# ----------------------------------------------------------------------------
def _gcn_layer_padded(a_bf16, z, w, b, alpha, tm, tk, tmx, xw_resident,
                      out_dtype, cap):
    n_pad, fp = z.shape
    hp = w.shape[1]

    # (1) XW = z @ W, row-tiled, bf16 in / bf16 out.
    xw = pl.pallas_call(
        _xw_kernel,
        out_shape=jax.ShapeDtypeStruct((n_pad, hp), jnp.bfloat16),
        grid_spec=pltpu.PrefetchScalarGridSpec(
            num_scalar_prefetch=0,
            grid=(n_pad // tmx,),
            in_specs=[
                pl.BlockSpec((tmx, fp), lambda i: (i, 0)),
                pl.BlockSpec((fp, hp), lambda i: (0, 0)),
            ],
            out_specs=pl.BlockSpec((tmx, hp), lambda i: (i, 0)),
        ),
        compiler_params=pltpu.CompilerParams(
            dimension_semantics=("parallel",),
            vmem_limit_bytes=_vmem_limit(
                2 * tmx * fp * 2 + 2 * fp * hp * 2 + 2 * tmx * hp * 2, cap),
        ),
    )(z, w)

    # (2) z = PReLU(A_hat @ XW + b), tiled over (row tiles, contraction tiles).
    if xw_resident:
        xw_spec = pl.BlockSpec((n_pad, hp), lambda i, k: (0, 0))   # fetched once
        xw_bytes = 2 * n_pad * hp * 2
        xw_hbm_reads = n_pad * hp * 2
    else:
        xw_spec = pl.BlockSpec((tk, hp), lambda i, k: (k, 0))
        xw_bytes = 2 * tk * hp * 2
        xw_hbm_reads = (n_pad // tm) * n_pad * hp * 2

    out_itemsize = jnp.dtype(out_dtype).itemsize
    kernel = functools.partial(_propagate_kernel, tk=tk)

    z_new = pl.pallas_call(
        kernel,
        out_shape=jax.ShapeDtypeStruct((n_pad, hp), out_dtype),
        grid_spec=pltpu.PrefetchScalarGridSpec(
            num_scalar_prefetch=0,
            grid=(n_pad // tm, n_pad // tk),
            in_specs=[
                pl.BlockSpec((tm, tk), lambda i, k: (i, k)),   # A_hat (bf16)
                xw_spec,                                       # XW    (bf16)
                pl.BlockSpec((1, hp), lambda i, k: (0, 0)),    # bias
                pl.BlockSpec((1, hp), lambda i, k: (0, 0)),    # PReLU alpha
            ],
            out_specs=pl.BlockSpec((tm, hp), lambda i, k: (i, 0)),
            scratch_shapes=[pltpu.VMEM((tm, hp), jnp.float32)],
        ),
        compiler_params=pltpu.CompilerParams(
            dimension_semantics=("parallel", "arbitrary"),
            vmem_limit_bytes=_vmem_limit(
                2 * tm * tk * 2 + xw_bytes + tm * hp * 4
                + 2 * tm * hp * out_itemsize + 4 * hp * 4, cap),
        ),
        cost_estimate=pl.CostEstimate(
            flops=2 * n_pad * n_pad * hp,
            transcendentals=0,
            bytes_accessed=(n_pad * n_pad * 2          # A stream (dominant)
                            + xw_hbm_reads
                            + n_pad * hp * out_itemsize),
        ),
    )(a_bf16, xw, b, alpha)
    return z_new


# ----------------------------------------------------------------------------
# Glue: normalized adjacency, full forward, params, reference
# ----------------------------------------------------------------------------
def normalized_adjacency(edge_index, num_nodes):
    """A_hat = D^{-1/2} (A + I) D^{-1/2} as a dense (N, N) float32 matrix."""
    # TODO(synk): PyG GCNConv neither symmetrizes nor dedups duplicate edges;
    # this dense build does both (matches the local JAX reference).
    src, dst = edge_index
    a = jnp.zeros((num_nodes, num_nodes), jnp.float32)
    a = a.at[dst, src].set(1.0)
    a = a.at[src, dst].set(1.0)                          # symmetrize
    a = a + jnp.eye(num_nodes, dtype=jnp.float32)        # self loops
    deg = jnp.sum(a, axis=1)
    d_inv_sqrt = jnp.where(deg > 0, 1.0 / jnp.sqrt(deg), 0.0)
    return a * d_inv_sqrt[:, None] * d_inv_sqrt[None, :]


@jax.jit
def gconv_forward(params, x, edge_index):
    """Mirrors GConv.forward: stacked GCNConv + per-channel PReLU."""
    n, f = x.shape
    h_out = params[-1]["w"].shape[1]
    num_layers = len(params)

    cap = _vmem_cap_bytes()
    budget = cap - max(8 << 20, cap // 8)    # ~56 MiB on v7x, ~112 MiB v5e/v6e

    hp_max = max(_round_up(layer["w"].shape[1], _LANE) for layer in params)
    n_pad, tm, tk, xw_resident = _choose_propagate_tiles(n, hp_max, budget)

    # Build A_hat in f32 at (N, N), cast to bf16 BEFORE padding so no padded
    # f32 N_pad^2 transient is ever materialized.
    a_hat = normalized_adjacency(edge_index, n)
    a_bf16 = _pad2d(a_hat.astype(jnp.bfloat16), n_pad, n_pad)

    # z carried in bf16 between layers (halves X read / z write streams).
    z = _pad2d(x, n_pad, _round_up(f, _LANE)).astype(jnp.bfloat16)
    for li, layer in enumerate(params):
        f_in, f_o = layer["w"].shape
        fp, hp = _round_up(f_in, _LANE), _round_up(f_o, _LANE)
        w_pad = _pad2d(layer["w"], fp, hp).astype(jnp.bfloat16)
        b_pad = _pad2d(layer["b"].reshape(1, -1), 1, hp)
        alpha_pad = _pad2d(layer["alpha"].reshape(1, -1), 1, hp)
        tmx = _choose_xw_tile(n_pad, fp, hp, budget)
        out_dtype = jnp.float32 if li == num_layers - 1 else jnp.bfloat16
        z = _gcn_layer_padded(a_bf16, z, w_pad, b_pad, alpha_pad,
                              tm, tk, tmx, xw_resident, out_dtype, cap)
    return z[:n, :h_out]


def gconv_reference(params, x, edge_index):
    """Plain-JAX f32 reference of the same forward pass."""
    a_hat = normalized_adjacency(edge_index, x.shape[0])
    z = x
    for layer in params:
        t = a_hat @ (z @ layer["w"]) + layer["b"][None, :]
        z = jnp.where(t > 0, t, layer["alpha"][None, :] * t)
    return z


def init_params(key, in_dim, hidden_dim, num_layers):
    params = []
    dims = [in_dim] + [hidden_dim] * num_layers
    keys = jax.random.split(key, num_layers)
    for i in range(num_layers):
        f_in, f_o = dims[i], dims[i + 1]
        bound = 1.0 / jnp.sqrt(jnp.float32(f_in))
        w = jax.random.uniform(keys[i], (f_in, f_o), jnp.float32, -bound, bound)
        b = jnp.zeros((f_o,), jnp.float32)
        alpha = jnp.full((f_o,), 0.25, jnp.float32)   # nn.PReLU(hidden_dim)
        params.append({"w": w, "b": b, "alpha": alpha})
    return params


# ----------------------------------------------------------------------------
if __name__ == "__main__":
    key = jax.random.PRNGKey(0)
    k_param, k_x, k_edge = jax.random.split(key, 3)

    num_nodes, in_dim, hidden_dim, num_layers, num_edges = 16, 8, 32, 2, 40

    x = jax.random.normal(k_x, (num_nodes, in_dim), jnp.float32)
    edge_index = jax.random.randint(k_edge, (2, num_edges), 0, num_nodes,
                                    dtype=jnp.int32)

    params = init_params(k_param, in_dim, hidden_dim, num_layers)

    z = gconv_forward(params, x, edge_index)
    jax.block_until_ready(z)

    assert z.shape == (num_nodes, hidden_dim)
    assert jnp.all(jnp.isfinite(z))

    # bf16 A_hat / z / W / XW streams, f32 accumulation -> relaxed tolerance.
    z_ref = gconv_reference(params, x, edge_index)
    assert jnp.allclose(z, z_ref, rtol=3e-2, atol=3e-2), \
        float(jnp.max(jnp.abs(z - z_ref)))

    print("KERNEL_OK")
</pallas_src>

<mosaic_0001>
module attributes {stable_mosaic.version = 11 : i64} {
  func.func @_xw_kernel(%arg0: i32, %arg1: memref<128x128xbf16, #tpu.memory_space<vmem>>, %arg2: memref<128x128xbf16, #tpu.memory_space<vmem>>, %arg3: memref<128x128xbf16, #tpu.memory_space<vmem>>) attributes {dimension_semantics = [#tpu.dimension_semantics<parallel>], iteration_bounds = array<i64: 1>, scalar_prefetch = 0 : i64, scratch_operands = 0 : i64, tpu.core_type = #tpu.core_type<tc>, window_params = [{transform_indices = @transform_0, window_bounds = array<i64: 128, 128>}, {pipeline_mode = #tpu.pipeline_mode<synchronous>, transform_indices = @transform_1, window_bounds = array<i64: 128, 128>}, {transform_indices = @transform_2, window_bounds = array<i64: 128, 128>}]} {
    %c0 = arith.constant 0 : index
    %c0_0 = arith.constant 0 : index
    %0 = vector.load %arg1[%c0, %c0_0] : memref<128x128xbf16, #tpu.memory_space<vmem>>, vector<128x128xbf16>
    %c0_1 = arith.constant 0 : index
    %c0_2 = arith.constant 0 : index
    %1 = vector.load %arg2[%c0_1, %c0_2] : memref<128x128xbf16, #tpu.memory_space<vmem>>, vector<128x128xbf16>
    %cst = arith.constant dense<0.000000e+00> : vector<128x128xf32>
    %2 = tpu.matmul %0, %1, %cst {dimension_numbers = #tpu.dot_dimension_numbers<[1], [0], [0], [1], [0, 0, 1, 1], [], []>} : vector<128x128xbf16>, vector<128x128xbf16>, vector<128x128xf32> -> vector<128x128xf32>
    %3 = arith.truncf %2 : vector<128x128xf32> to vector<128x128xbf16>
    %c0_3 = arith.constant 0 : index
    %c0_4 = arith.constant 0 : index
    %4 = vector.load %arg3[%c0_3, %c0_4] : memref<128x128xbf16, #tpu.memory_space<vmem>>, vector<128x128xbf16>
    tpu.vector_store %arg3[%c0_3, %c0_4], %3 {strides = array<i32>} : memref<128x128xbf16, #tpu.memory_space<vmem>>, vector<128x128xbf16>,
    return
  }
  func.func @transform_0(%arg0: i32) -> (i32, i32) {
    %c0_i32 = arith.constant 0 : i32
    %c0_i32_0 = arith.constant 0 : i32
    return %arg0, %c0_i32 : i32, i32
  }
  func.func @transform_1(%arg0: i32) -> (i32, i32) {
    %c0_i32 = arith.constant 0 : i32
    %c0_i32_0 = arith.constant 0 : i32
    %c0_i32_1 = arith.constant 0 : i32
    return %c0_i32, %c0_i32_0 : i32, i32
  }
  func.func @transform_2(%arg0: i32) -> (i32, i32) {
    %c0_i32 = arith.constant 0 : i32
    %c0_i32_0 = arith.constant 0 : i32
    return %arg0, %c0_i32 : i32, i32
  }
}

module attributes {stable_mosaic.version = 11 : i64} {
  func.func @_propagate_kernel(%arg0: i32, %arg1: i32, %arg2: memref<128x128xbf16, #tpu.memory_space<vmem>>, %arg3: memref<128x128xbf16, #tpu.memory_space<vmem>>, %arg4: memref<1x128xf32, #tpu.memory_space<vmem>>, %arg5: memref<1x128xf32, #tpu.memory_space<vmem>>, %arg6: memref<128x128xbf16, #tpu.memory_space<vmem>>, %arg7: memref<128x128xf32, #tpu.memory_space<vmem>>) attributes {dimension_semantics = [#tpu.dimension_semantics<parallel>, #tpu.dimension_semantics<arbitrary>], iteration_bounds = array<i64: 1, 1>, scalar_prefetch = 0 : i64, scratch_operands = 1 : i64, tpu.core_type = #tpu.core_type<tc>, window_params = [{transform_indices = @transform_0, window_bounds = array<i64: 128, 128>}, {pipeline_mode = #tpu.pipeline_mode<synchronous>, transform_indices = @transform_1, window_bounds = array<i64: 128, 128>}, {pipeline_mode = #tpu.pipeline_mode<synchronous>, transform_indices = @transform_2, window_bounds = array<i64: 1, 128>}, {pipeline_mode = #tpu.pipeline_mode<synchronous>, transform_indices = @transform_3, window_bounds = array<i64: 1, 128>}, {transform_indices = @transform_4, window_bounds = array<i64: 128, 128>}]} {
    %c0_i32 = arith.constant 0 : i32
    %0 = arith.cmpi eq, %arg1, %c0_i32 : i32
    %1 = arith.extui %0 : i1 to i32
    %c0_i32_0 = arith.constant 0 : i32
    %2 = arith.cmpi ne, %1, %c0_i32_0 : i32
    scf.if %2 {
      %cst_10 = arith.constant 0.000000e+00 : f32
      %12 = vector.broadcast %cst_10 : f32 to vector<128x128xf32>
      %c0_11 = arith.constant 0 : index
      %c0_12 = arith.constant 0 : index
      %13 = vector.load %arg7[%c0_11, %c0_12] : memref<128x128xf32, #tpu.memory_space<vmem>>, vector<128x128xf32>
      tpu.vector_store %arg7[%c0_11, %c0_12], %12 {strides = array<i32>} : memref<128x128xf32, #tpu.memory_space<vmem>>, vector<128x128xf32>,
    } else {
    }
    %c0 = arith.constant 0 : index
    %c0_1 = arith.constant 0 : index
    %3 = vector.load %arg3[%c0, %c0_1] : memref<128x128xbf16, #tpu.memory_space<vmem>>, vector<128x128xbf16>
    %c0_2 = arith.constant 0 : index
    %c0_3 = arith.constant 0 : index
    %4 = vector.load %arg7[%c0_2, %c0_3] : memref<128x128xf32, #tpu.memory_space<vmem>>, vector<128x128xf32>
    %c0_4 = arith.constant 0 : index
    %c0_5 = arith.constant 0 : index
    %5 = vector.load %arg2[%c0_4, %c0_5] : memref<128x128xbf16, #tpu.memory_space<vmem>>, vector<128x128xbf16>
    %cst = arith.constant dense<0.000000e+00> : vector<128x128xf32>
    %6 = tpu.matmul %5, %3, %cst {dimension_numbers = #tpu.dot_dimension_numbers<[1], [0], [0], [1], [0, 0, 1, 1], [], []>} : vector<128x128xbf16>, vector<128x128xbf16>, vector<128x128xf32> -> vector<128x128xf32>
    %7 = arith.addf %4, %6 : vector<128x128xf32>
    %c0_6 = arith.constant 0 : index
    %c0_7 = arith.constant 0 : index
    %8 = vector.load %arg7[%c0_6, %c0_7] : memref<128x128xf32, #tpu.memory_space<vmem>>, vector<128x128xf32>
    tpu.vector_store %arg7[%c0_6, %c0_7], %7 {strides = array<i32>} : memref<128x128xf32, #tpu.memory_space<vmem>>, vector<128x128xf32>,
    %c0_i32_8 = arith.constant 0 : i32
    %9 = arith.cmpi eq, %arg1, %c0_i32_8 : i32
    %10 = arith.extui %9 : i1 to i32
    %c0_i32_9 = arith.constant 0 : i32
    %11 = arith.cmpi ne, %10, %c0_i32_9 : i32
    scf.if %11 {
      %c0_10 = arith.constant 0 : index
      %c0_11 = arith.constant 0 : index
      %12 = vector.load %arg7[%c0_10, %c0_11] : memref<128x128xf32, #tpu.memory_space<vmem>>, vector<128x128xf32>
      %c0_12 = arith.constant 0 : index
      %c0_13 = arith.constant 0 : index
      %13 = vector.load %arg4[%c0_12, %c0_13] : memref<1x128xf32, #tpu.memory_space<vmem>>, vector<1x128xf32>
      %14 = vector.broadcast %13 : vector<1x128xf32> to vector<128x128xf32>
      %15 = arith.addf %12, %14 : vector<128x128xf32>
      %cst_14 = arith.constant 0.000000e+00 : f32
      %16 = vector.broadcast %cst_14 : f32 to vector<128x128xf32>
      %17 = arith.cmpf ogt, %15, %16 : vector<128x128xf32>
      %c0_15 = arith.constant 0 : index
      %c0_16 = arith.constant 0 : index
      %18 = vector.load %arg5[%c0_15, %c0_16] : memref<1x128xf32, #tpu.memory_space<vmem>>, vector<1x128xf32>
      %19 = vector.broadcast %18 : vector<1x128xf32> to vector<128x128xf32>
      %20 = arith.mulf %19, %15 : vector<128x128xf32>
      %21 = arith.select %17, %15, %20 : vector<128x128xi1>, vector<128x128xf32>
      %22 = arith.truncf %21 : vector<128x128xf32> to vector<128x128xbf16>
      %c0_17 = arith.constant 0 : index
      %c0_18 = arith.constant 0 : index
      %23 = vector.load %arg6[%c0_17, %c0_18] : memref<128x128xbf16, #tpu.memory_space<vmem>>, vector<128x128xbf16>
      tpu.vector_store %arg6[%c0_17, %c0_18], %22 {strides = array<i32>} : memref<128x128xbf16, #tpu.memory_space<vmem>>, vector<128x128xbf16>,
    } else {
    }
    return
  }
  func.func @transform_0(%arg0: i32, %arg1: i32) -> (i32, i32) {
    %c0_i32 = arith.constant 0 : i32
    return %arg0, %arg1 : i32, i32
  }
  func.func @transform_1(%arg0: i32, %arg1: i32) -> (i32, i32) {
    %c0_i32 = arith.constant 0 : i32
    %c0_i32_0 = arith.constant 0 : i32
    %c0_i32_1 = arith.constant 0 : i32
    return %c0_i32, %c0_i32_0 : i32, i32
  }
  func.func @transform_2(%arg0: i32, %arg1: i32) -> (i32, i32) {
    %c0_i32 = arith.constant 0 : i32
    %c0_i32_0 = arith.constant 0 : i32
    %c0_i32_1 = arith.constant 0 : i32
    return %c0_i32, %c0_i32_0 : i32, i32
  }
  func.func @transform_3(%arg0: i32, %arg1: i32) -> (i32, i32) {
    %c0_i32 = arith.constant 0 : i32
    %c0_i32_0 = arith.constant 0 : i32
    %c0_i32_1 = arith.constant 0 : i32
    return %c0_i32, %c0_i32_0 : i32, i32
  }
  func.func @transform_4(%arg0: i32, %arg1: i32) -> (i32, i32) {
    %c0_i32 = arith.constant 0 : i32
    %c0_i32_0 = arith.constant 0 : i32
    return %arg0, %c0_i32 : i32, i32
  }
}

module attributes {stable_mosaic.version = 11 : i64} {
  func.func @_propagate_kernel(%arg0: i32, %arg1: i32, %arg2: memref<128x128xbf16, #tpu.memory_space<vmem>>, %arg3: memref<128x128xbf16, #tpu.memory_space<vmem>>, %arg4: memref<1x128xf32, #tpu.memory_space<vmem>>, %arg5: memref<1x128xf32, #tpu.memory_space<vmem>>, %arg6: memref<128x128xf32, #tpu.memory_space<vmem>>, %arg7: memref<128x128xf32, #tpu.memory_space<vmem>>) attributes {dimension_semantics = [#tpu.dimension_semantics<parallel>, #tpu.dimension_semantics<arbitrary>], iteration_bounds = array<i64: 1, 1>, scalar_prefetch = 0 : i64, scratch_operands = 1 : i64, tpu.core_type = #tpu.core_type<tc>, window_params = [{transform_indices = @transform_0, window_bounds = array<i64: 128, 128>}, {pipeline_mode = #tpu.pipeline_mode<synchronous>, transform_indices = @transform_1, window_bounds = array<i64: 128, 128>}, {pipeline_mode = #tpu.pipeline_mode<synchronous>, transform_indices = @transform_2, window_bounds = array<i64: 1, 128>}, {pipeline_mode = #tpu.pipeline_mode<synchronous>, transform_indices = @transform_3, window_bounds = array<i64: 1, 128>}, {transform_indices = @transform_4, window_bounds = array<i64: 128, 128>}]} {
    %c0_i32 = arith.constant 0 : i32
    %0 = arith.cmpi eq, %arg1, %c0_i32 : i32
    %1 = arith.extui %0 : i1 to i32
    %c0_i32_0 = arith.constant 0 : i32
    %2 = arith.cmpi ne, %1, %c0_i32_0 : i32
    scf.if %2 {
      %cst_10 = arith.constant 0.000000e+00 : f32
      %12 = vector.broadcast %cst_10 : f32 to vector<128x128xf32>
      %c0_11 = arith.constant 0 : index
      %c0_12 = arith.constant 0 : index
      %13 = vector.load %arg7[%c0_11, %c0_12] : memref<128x128xf32, #tpu.memory_space<vmem>>, vector<128x128xf32>
      tpu.vector_store %arg7[%c0_11, %c0_12], %12 {strides = array<i32>} : memref<128x128xf32, #tpu.memory_space<vmem>>, vector<128x128xf32>,
    } else {
    }
    %c0 = arith.constant 0 : index
    %c0_1 = arith.constant 0 : index
    %3 = vector.load %arg3[%c0, %c0_1] : memref<128x128xbf16, #tpu.memory_space<vmem>>, vector<128x128xbf16>
    %c0_2 = arith.constant 0 : index
    %c0_3 = arith.constant 0 : index
    %4 = vector.load %arg7[%c0_2, %c0_3] : memref<128x128xf32, #tpu.memory_space<vmem>>, vector<128x128xf32>
    %c0_4 = arith.constant 0 : index
    %c0_5 = arith.constant 0 : index
    %5 = vector.load %arg2[%c0_4, %c0_5] : memref<128x128xbf16, #tpu.memory_space<vmem>>, vector<128x128xbf16>
    %cst = arith.constant dense<0.000000e+00> : vector<128x128xf32>
    %6 = tpu.matmul %5, %3, %cst {dimension_numbers = #tpu.dot_dimension_numbers<[1], [0], [0], [1], [0, 0, 1, 1], [], []>} : vector<128x128xbf16>, vector<128x128xbf16>, vector<128x128xf32> -> vector<128x128xf32>
    %7 = arith.addf %4, %6 : vector<128x128xf32>
    %c0_6 = arith.constant 0 : index
    %c0_7 = arith.constant 0 : index
    %8 = vector.load %arg7[%c0_6, %c0_7] : memref<128x128xf32, #tpu.memory_space<vmem>>, vector<128x128xf32>
    tpu.vector_store %arg7[%c0_6, %c0_7], %7 {strides = array<i32>} : memref<128x128xf32, #tpu.memory_space<vmem>>, vector<128x128xf32>,
    %c0_i32_8 = arith.constant 0 : i32
    %9 = arith.cmpi eq, %arg1, %c0_i32_8 : i32
    %10 = arith.extui %9 : i1 to i32
    %c0_i32_9 = arith.constant 0 : i32
    %11 = arith.cmpi ne, %10, %c0_i32_9 : i32
    scf.if %11 {
      %c0_10 = arith.constant 0 : index
      %c0_11 = arith.constant 0 : index
      %12 = vector.load %arg7[%c0_10, %c0_11] : memref<128x128xf32, #tpu.memory_space<vmem>>, vector<128x128xf32>
      %c0_12 = arith.constant 0 : index
      %c0_13 = arith.constant 0 : index
      %13 = vector.load %arg4[%c0_12, %c0_13] : memref<1x128xf32, #tpu.memory_space<vmem>>, vector<1x128xf32>
      %14 = vector.broadcast %13 : vector<1x128xf32> to vector<128x128xf32>
      %15 = arith.addf %12, %14 : vector<128x128xf32>
      %cst_14 = arith.constant 0.000000e+00 : f32
      %16 = vector.broadcast %cst_14 : f32 to vector<128x128xf32>
      %17 = arith.cmpf ogt, %15, %16 : vector<128x128xf32>
      %c0_15 = arith.constant 0 : index
      %c0_16 = arith.constant 0 : index
      %18 = vector.load %arg5[%c0_15, %c0_16] : memref<1x128xf32, #tpu.memory_space<vmem>>, vector<1x128xf32>
      %19 = vector.broadcast %18 : vector<1x128xf32> to vector<128x128xf32>
      %20 = arith.mulf %19, %15 : vector<128x128xf32>
      %21 = arith.select %17, %15, %20 : vector<128x128xi1>, vector<128x128xf32>
      %c0_17 = arith.constant 0 : index
      %c0_18 = arith.constant 0 : index
      %22 = vector.load %arg6[%c0_17, %c0_18] : memref<128x128xf32, #tpu.memory_space<vmem>>, vector<128x128xf32>
      tpu.vector_store %arg6[%c0_17, %c0_18], %21 {strides = array<i32>} : memref<128x128xf32, #tpu.memory_space<vmem>>, vector<128x128xf32>,
    } else {
    }
    return
  }
  func.func @transform_0(%arg0: i32, %arg1: i32) -> (i32, i32) {
    %c0_i32 = arith.constant 0 : i32
    return %arg0, %arg1 : i32, i32
  }
  func.func @transform_1(%arg0: i32, %arg1: i32) -> (i32, i32) {
    %c0_i32 = arith.constant 0 : i32
    %c0_i32_0 = arith.constant 0 : i32
    %c0_i32_1 = arith.constant 0 : i32
    return %c0_i32, %c0_i32_0 : i32, i32
  }
  func.func @transform_2(%arg0: i32, %arg1: i32) -> (i32, i32) {
    %c0_i32 = arith.constant 0 : i32
    %c0_i32_0 = arith.constant 0 : i32
    %c0_i32_1 = arith.constant 0 : i32
    return %c0_i32, %c0_i32_0 : i32, i32
  }
  func.func @transform_3(%arg0: i32, %arg1: i32) -> (i32, i32) {
    %c0_i32 = arith.constant 0 : i32
    %c0_i32_0 = arith.constant 0 : i32
    %c0_i32_1 = arith.constant 0 : i32
    return %c0_i32, %c0_i32_0 : i32, i32
  }
  func.func @transform_4(%arg0: i32, %arg1: i32) -> (i32, i32) {
    %c0_i32 = arith.constant 0 : i32
    %c0_i32_0 = arith.constant 0 : i32
    return %arg0, %c0_i32 : i32, i32
  }
}

</mosaic_0001>

<llo_original>
// kernel: gconv_forward.4
$region0: #{gconv_forward.4}
  #allocation0 [shape = 'u32[]', space=smem, size = 0x4, offset = 0x4, fixed_abs, tag = 'smem constant byte address 0x4 - core index']
  #allocation1 [shape = 'u32[144,128]{1,0:T(1,128)}', space=vmem, size = 0x12000, scoped, tag = 'internal scratch']
  %s0 = inlined_call_operand.vmem [shape: bf16[128,128], index: 0, kind: input, shape index: {}]
  %s1 = inlined_call_operand.vmem [shape: bf16[128,128], index: 1, kind: input, shape index: {}]
  %s2 = inlined_call_operand.vmem [shape: bf16[128,128], index: 2, kind: output, shape index: {}]
  %s3 = sld [smem:[#allocation0]]
  $region18: #{gconv_forward.4} parent=0
    _
  %s5 = ssub.s32 1, %s3
  %s6 = scalar_select 0, %s5, %s3
  // Predicated region
  $region2: #{gconv_forward.4} parent=0 // pred_check
    _
  $region3: #{gconv_forward.4} parent=0 // pred_check_branch
    %8 = sbr.rel (0) target = $region5
  $region4: #{gconv_forward.4} parent=0 // pred_region
    _
  $region5: #{gconv_forward.4} parent=0 // pred_fallthru
    _
  // Predicated region
  $region6: #{gconv_forward.4} parent=0 // pred_check
    _
  $region7: #{gconv_forward.4} parent=0 // pred_check_branch
    %10 = sbr.rel (0) target = $region9
  $region8: #{gconv_forward.4} parent=0 // pred_region
    _
  $region9: #{gconv_forward.4} parent=0 // pred_fallthru
    _
  %v12 = vld [vmem:[%s0] sm:$0xf]
  %v13 = vld [vmem:[%s0 + $0x4] sm:$0xf]
  %v14 = vld [vmem:[%s0 + $0x8] sm:$0xf]
  %v15 = vld [vmem:[%s0 + $0xc] sm:$0xf]
  %v16 = vld [vmem:[%s0 + $0x10] sm:$0xf]
  %v17 = vld [vmem:[%s0 + $0x14] sm:$0xf]
  %v18 = vld [vmem:[%s0 + $0x18] sm:$0xf]
  %v19 = vld [vmem:[%s0 + $0x1c] sm:$0xf]
  %v20 = vld [vmem:[%s0 + $0x20] sm:$0xf]
  %v21 = vld [vmem:[%s0 + $0x24] sm:$0xf]
  %v22 = vld [vmem:[%s0 + $0x28] sm:$0xf]
  %v23 = vld [vmem:[%s0 + $0x2c] sm:$0xf]
  %v24 = vld [vmem:[%s0 + $0x30] sm:$0xf]
  %v25 = vld [vmem:[%s0 + $0x34] sm:$0xf]
  %v26 = vld [vmem:[%s0 + $0x38] sm:$0xf]
  %v27 = vld [vmem:[%s0 + $0x3c] sm:$0xf]
  %v28 = vld [vmem:[%s1] sm:$0xf]
  %v29 = vld [vmem:[%s1 + $0x4] sm:$0xf]
  %v30 = vld [vmem:[%s1 + $0x8] sm:$0xf]
  %v31 = vld [vmem:[%s1 + $0xc] sm:$0xf]
  %v32 = vld [vmem:[%s1 + $0x10] sm:$0xf]
  %v33 = vld [vmem:[%s1 + $0x14] sm:$0xf]
  %v34 = vld [vmem:[%s1 + $0x18] sm:$0xf]
  %v35 = vld [vmem:[%s1 + $0x1c] sm:$0xf]
  %v36 = vld [vmem:[%s1 + $0x20] sm:$0xf]
  %v37 = vld [vmem:[%s1 + $0x24] sm:$0xf]
  %v38 = vld [vmem:[%s1 + $0x28] sm:$0xf]
  %v39 = vld [vmem:[%s1 + $0x2c] sm:$0xf]
  %v40 = vld [vmem:[%s1 + $0x30] sm:$0xf]
  %v41 = vld [vmem:[%s1 + $0x34] sm:$0xf]
  %v42 = vld [vmem:[%s1 + $0x38] sm:$0xf]
  %v43 = vld [vmem:[%s1 + $0x3c] sm:$0xf]
  %v60 = vunpack.c.l.b16 %v12
  %v61 = vunpack.c.l.b16 %v13
  %v62 = vunpack.c.l.b16 %v14
  %v63 = vunpack.c.l.b16 %v15
  %v64 = vunpack.c.l.b16 %v16
  %v65 = vunpack.c.l.b16 %v17
  %v66 = vunpack.c.l.b16 %v18
  %v67 = vunpack.c.l.b16 %v19
  %v68 = vunpack.c.l.b16 %v20
  %v69 = vunpack.c.l.b16 %v21
  %v70 = vunpack.c.l.b16 %v22
  %v71 = vunpack.c.l.b16 %v23
  %v72 = vunpack.c.l.b16 %v24
  %v73 = vunpack.c.l.b16 %v25
  %v74 = vunpack.c.l.b16 %v26
  %v75 = vunpack.c.l.b16 %v27
  %v76 = vpack.c.b16 %v61, %v60
  %v77 = vpack.c.b16 %v63, %v62
  %v78 = vpack.c.b16 %v65, %v64
  %v79 = vpack.c.b16 %v67, %v66
  %v80 = vpack.c.b16 %v69, %v68
  %v81 = vpack.c.b16 %v71, %v70
  %v82 = vpack.c.b16 %v73, %v72
  %v83 = vpack.c.b16 %v75, %v74
  %v108 = vunpack.c.l.b16 %v28
  %v109 = vunpack.c.l.b16 %v29
  %v110 = vunpack.c.l.b16 %v30
  %v111 = vunpack.c.l.b16 %v31
  %v112 = vunpack.c.l.b16 %v32
  %v113 = vunpack.c.l.b16 %v33
  %v114 = vunpack.c.l.b16 %v34
  %v115 = vunpack.c.l.b16 %v35
  %v116 = vunpack.c.l.b16 %v36
  %v117 = vunpack.c.l.b16 %v37
  %v118 = vunpack.c.l.b16 %v38
  %v119 = vunpack.c.l.b16 %v39
  %v120 = vunpack.c.l.b16 %v40
  %v121 = vunpack.c.l.b16 %v41
  %v122 = vunpack.c.l.b16 %v42
  %v123 = vunpack.c.l.b16 %v43
  %v124 = vpack.c.b16 %v109, %v108
  %v125 = vpack.c.b16 %v111, %v110
  %v126 = vpack.c.b16 %v113, %v112
  %v127 = vpack.c.b16 %v115, %v114
  %v128 = vpack.c.b16 %v117, %v116
  %v129 = vpack.c.b16 %v119, %v118
  %v130 = vpack.c.b16 %v121, %v120
  %v131 = vpack.c.b16 %v123, %v122
  %140 = vmatprep.subr.bf16.mxu0 0
  %141 = vmatpush1.bf16.msra.mxu0 %v131
  %142 = vmatprep.subr.bf16.mxu0 0
  %143 = vmatpush1.bf16.msra.mxu0 %v130
  %144 = vmatprep.subr.bf16.mxu0 0
  %145 = vmatpush1.bf16.msra.mxu0 %v129
  %146 = vmatprep.subr.bf16.mxu0 0
  %147 = vmatpush1.bf16.msra.mxu0 %v128
  %148 = vmatprep.subr.bf16.mxu0 0
  %149 = vmatpush1.bf16.msra.mxu0 %v127
  %150 = vmatprep.subr.bf16.mxu0 0
  %151 = vmatpush1.bf16.msra.mxu0 %v126
  %152 = vmatprep.subr.bf16.mxu0 0
  %153 = vmatpush1.bf16.msra.mxu0 %v125
  %154 = vmatprep.subr.bf16.mxu0 0
  %155 = vmatpush1.bf16.msra.mxu0 %v124
  %156 = vmatprep.subr.bf16.mxu0 0
  %157 = vmatpush2.bf16.msra.mxu0 0
  %158 = vmatprep.subr.bf16.mxu0 0
  %159 = vmatpush2.bf16.msra.mxu0 0
  %160 = vmatprep.subr.bf16.mxu0 0
  %161 = vmatpush2.bf16.msra.mxu0 0
  %162 = vmatprep.subr.bf16.mxu0 0
  %163 = vmatpush2.bf16.msra.mxu0 0
  %164 = vmatprep.subr.bf16.mxu0 0
  %165 = vmatpush2.bf16.msra.mxu0 0
  %166 = vmatprep.subr.bf16.mxu0 0
  %167 = vmatpush2.bf16.msra.mxu0 0
  %168 = vmatprep.subr.bf16.mxu0 0
  %169 = vmatpush2.bf16.msra.mxu0 0
  %170 = vmatprep.subr.bf16.mxu0 0
  %171 = vmatpush2.bf16.msra.mxu0 0
  %172 = vmatprep.mubr.bf16.mxu0 0
  %173 = vmatmul.mubr.bf16.gmra.mxu0 %v76
  %v174 = vpop.f32.mrf.mxu0
  %v175 = vadd.f32 0.0, %v174
  %v176 = vpop.f32.mrf.mxu0
  %v177 = vpop.f32.mrf.mxu0
  %v178 = vadd.f32 0.0, %v177
  %v179 = vpop.f32.mrf.mxu0
  %180 = vmatprep.mubr.bf16.mxu0 0
  %181 = vmatmul.mubr.bf16.gmra.mxu0 %v77
  %v182 = vpop.f32.mrf.mxu0
  %v183 = vadd.f32 0.0, %v182
  %v184 = vpop.f32.mrf.mxu0
  %v185 = vpop.f32.mrf.mxu0
  %v186 = vadd.f32 0.0, %v185
  %v187 = vpop.f32.mrf.mxu0
  %188 = vmatprep.mubr.bf16.mxu0 0
  %189 = vmatmul.mubr.bf16.gmra.mxu0 %v78
  %v190 = vpop.f32.mrf.mxu0
  %v191 = vadd.f32 0.0, %v190
  %v192 = vpop.f32.mrf.mxu0
  %v193 = vpop.f32.mrf.mxu0
  %v194 = vadd.f32 0.0, %v193
  %v195 = vpop.f32.mrf.mxu0
  %196 = vmatprep.mubr.bf16.mxu0 0
  %197 = vmatmul.mubr.bf16.gmra.mxu0 %v79
  %v198 = vpop.f32.mrf.mxu0
  %v199 = vadd.f32 0.0, %v198
  %v200 = vpop.f32.mrf.mxu0
  %v201 = vpop.f32.mrf.mxu0
  %v202 = vadd.f32 0.0, %v201
  %v203 = vpop.f32.mrf.mxu0
  %204 = vmatprep.mubr.bf16.mxu0 0
  %205 = vmatmul.mubr.bf16.gmra.mxu0 %v80
  %v206 = vpop.f32.mrf.mxu0
  %v207 = vadd.f32 0.0, %v206
  %v208 = vpop.f32.mrf.mxu0
  %v209 = vpop.f32.mrf.mxu0
  %v210 = vadd.f32 0.0, %v209
  %v211 = vpop.f32.mrf.mxu0
  %212 = vmatprep.mubr.bf16.mxu0 0
  %213 = vmatmul.mubr.bf16.gmra.mxu0 %v81
  %v214 = vpop.f32.mrf.mxu0
  %v215 = vadd.f32 0.0, %v214
  %v216 = vpop.f32.mrf.mxu0
  %v217 = vpop.f32.mrf.mxu0
  %v218 = vadd.f32 0.0, %v217
  %v219 = vpop.f32.mrf.mxu0
  %220 = vmatprep.mubr.bf16.mxu0 0
  %221 = vmatmul.mubr.bf16.gmra.mxu0 %v82
  %v222 = vpop.f32.mrf.mxu0
  %v223 = vadd.f32 0.0, %v222
  %v224 = vpop.f32.mrf.mxu0
  %v225 = vpop.f32.mrf.mxu0
  %v226 = vadd.f32 0.0, %v225
  %v227 = vpop.f32.mrf.mxu0
  %228 = vmatprep.mubr.bf16.mxu0 0
  %229 = vmatmul.mubr.bf16.gmra.mxu0 %v83
  %v230 = vpop.f32.mrf.mxu0
  %v231 = vadd.f32 0.0, %v230
  %v232 = vpop.f32.mrf.mxu0
  %v233 = vpop.f32.mrf.mxu0
  %v234 = vadd.f32 0.0, %v233
  %v235 = vpop.f32.mrf.mxu0
  %236 = vdwg.mxu0
  %v237 = vpack.c.bf16 %v178, %v175
  %v238 = vpack.c.bf16 %v186, %v183
  %v239 = vpack.c.bf16 %v194, %v191
  %v240 = vpack.c.bf16 %v202, %v199
  %v241 = vpack.c.bf16 %v210, %v207
  %v242 = vpack.c.bf16 %v218, %v215
  %v243 = vpack.c.bf16 %v226, %v223
  %v244 = vpack.c.bf16 %v234, %v231
  %v253 = vunpack.c.l.b16 %v237
  %v254 = vunpack.c.h.b16 %v237
  %v255 = vunpack.c.l.b16 %v238
  %v256 = vunpack.c.h.b16 %v238
  %v257 = vunpack.c.l.b16 %v239
  %v258 = vunpack.c.h.b16 %v239
  %v259 = vunpack.c.l.b16 %v240
  %v260 = vunpack.c.h.b16 %v240
  %v261 = vunpack.c.l.b16 %v241
  %v262 = vunpack.c.h.b16 %v241
  %v263 = vunpack.c.l.b16 %v242
  %v264 = vunpack.c.h.b16 %v242
  %v265 = vunpack.c.l.b16 %v243
  %v266 = vunpack.c.h.b16 %v243
  %v267 = vunpack.c.l.b16 %v244
  %v268 = vunpack.c.h.b16 %v244
  %v269 = vpack.c.b16 %v253, %v253
  %v270 = vpack.c.b16 %v254, %v254
  %v271 = vpack.c.b16 %v255, %v255
  %v272 = vpack.c.b16 %v256, %v256
  %v273 = vpack.c.b16 %v257, %v257
  %v274 = vpack.c.b16 %v258, %v258
  %v275 = vpack.c.b16 %v259, %v259
  %v276 = vpack.c.b16 %v260, %v260
  %v277 = vpack.c.b16 %v261, %v261
  %v278 = vpack.c.b16 %v262, %v262
  %v279 = vpack.c.b16 %v263, %v263
  %v280 = vpack.c.b16 %v264, %v264
  %v281 = vpack.c.b16 %v265, %v265
  %v282 = vpack.c.b16 %v266, %v266
  %v283 = vpack.c.b16 %v267, %v267
  %v284 = vpack.c.b16 %v268, %v268
  %301 = vst [vmem:[%s2] sm:$0xf] %v269
  %302 = vst [vmem:[%s2 + $0x4] sm:$0xf] %v270
  %303 = vst [vmem:[%s2 + $0x8] sm:$0xf] %v271
  %304 = vst [vmem:[%s2 + $0xc] sm:$0xf] %v272
  %305 = vst [vmem:[%s2 + $0x10] sm:$0xf] %v273
  %306 = vst [vmem:[%s2 + $0x14] sm:$0xf] %v274
  %307 = vst [vmem:[%s2 + $0x18] sm:$0xf] %v275
  %308 = vst [vmem:[%s2 + $0x1c] sm:$0xf] %v276
  %309 = vst [vmem:[%s2 + $0x20] sm:$0xf] %v277
  %310 = vst [vmem:[%s2 + $0x24] sm:$0xf] %v278
  %311 = vst [vmem:[%s2 + $0x28] sm:$0xf] %v279
  %312 = vst [vmem:[%s2 + $0x2c] sm:$0xf] %v280
  %313 = vst [vmem:[%s2 + $0x30] sm:$0xf] %v281
  %314 = vst [vmem:[%s2 + $0x34] sm:$0xf] %v282
  %315 = vst [vmem:[%s2 + $0x38] sm:$0xf] %v283
  %316 = vst [vmem:[%s2 + $0x3c] sm:$0xf] %v284
  // Predicated region
  $region10: #{gconv_forward.4} parent=0 // pred_check
    _
  $region11: #{gconv_forward.4} parent=0 // pred_check_branch
    %318 = sbr.rel (0) target = $region13
  $region12: #{gconv_forward.4} parent=0 // pred_region
    _
  $region13: #{gconv_forward.4} parent=0 // pred_fallthru
    _
  // Predicated region
  $region14: #{gconv_forward.4} parent=0 // pred_check
    _
  $region15: #{gconv_forward.4} parent=0 // pred_check_branch
    %320 = sbr.rel (0) target = $region17
  $region16: #{gconv_forward.4} parent=0 // pred_region
    _
  $region17: #{gconv_forward.4} parent=0 // pred_fallthru
    _

// kernel: gconv_forward.5
$region0: #{gconv_forward.5}
  #allocation0 [shape = 'u32[]', space=smem, size = 0x4, offset = 0x4, fixed_abs, tag = 'smem constant byte address 0x4 - core index']
  #allocation1 [shape = 'u32[144,128]{1,0:T(1,128)}', space=vmem, size = 0x12000, scoped, tag = 'internal scratch']
  #allocation2 [shape = 'f32[128,128]{1,0:T(8,128)}', space=vmem, size = 0x10000, scoped, tag = 'scratch operand']
  %s0 = inlined_call_operand.vmem [shape: bf16[128,128], index: 0, kind: input, shape index: {}]
  %s1 = inlined_call_operand.vmem [shape: bf16[128,128], index: 1, kind: input, shape index: {}]
  %s2 = inlined_call_operand.vmem [shape: f32[1,128], index: 2, kind: input, shape index: {}]
  %s3 = inlined_call_operand.vmem [shape: f32[1,128], index: 3, kind: input, shape index: {}]
  %s4 = inlined_call_operand.vmem [shape: bf16[128,128], index: 4, kind: output, shape index: {}]
  %s5 = sld [smem:[#allocation0]]
  $region34: #{gconv_forward.5} parent=0
    _
  %s7 = ssub.s32 1, %s5
  %s8 = scalar_select 0, %s7, %s5
  // Predicated region
  $region2: #{gconv_forward.5} parent=0 // pred_check
    _
  $region3: #{gconv_forward.5} parent=0 // pred_check_branch
    %10 = sbr.rel (0) target = $region5
  $region4: #{gconv_forward.5} parent=0 // pred_region
    _
  $region5: #{gconv_forward.5} parent=0 // pred_fallthru
    _
  // Predicated region
  $region6: #{gconv_forward.5} parent=0 // pred_check
    _
  $region7: #{gconv_forward.5} parent=0 // pred_check_branch
    %12 = sbr.rel (0) target = $region9
  $region8: #{gconv_forward.5} parent=0 // pred_region
    _
  $region9: #{gconv_forward.5} parent=0 // pred_fallthru
    _
  // Predicated region
  $region10: #{gconv_forward.5} parent=0 // pred_check
    _
  $region11: #{gconv_forward.5} parent=0 // pred_check_branch
    %14 = sbr.rel (0) target = $region13
  $region12: #{gconv_forward.5} parent=0 // pred_region
    _
  $region13: #{gconv_forward.5} parent=0 // pred_fallthru
    _
  // Predicated region
  $region14: #{gconv_forward.5} parent=0 // pred_check
    _
  $region15: #{gconv_forward.5} parent=0 // pred_check_branch
    %16 = sbr.rel (0) target = $region17
  $region16: #{gconv_forward.5} parent=0 // pred_region
    _
  $region17: #{gconv_forward.5} parent=0 // pred_fallthru
    _
  %p18 = scmp.eq.s32.totalorder 0, 0
  // Predicated region
  $region18: #{gconv_forward.5} parent=0 // pred_check
    %p19 = pneg %p18
  $region19: #{gconv_forward.5} parent=0 // pred_check_branch
    %21 = sbr.rel (%p19) target = $region21
  $region20: #{gconv_forward.5} parent=0 // pred_region
    %22 = vst [vmem:[#allocation2] sm:$0xff] 0.0
    %23 = vst [vmem:[#allocation2 + $0x8] sm:$0xff] 0.0
    %24 = vst [vmem:[#allocation2 + $0x10] sm:$0xff] 0.0
    %25 = vst [vmem:[#allocation2 + $0x18] sm:$0xff] 0.0
    %26 = vst [vmem:[#allocation2 + $0x20] sm:$0xff] 0.0
    %27 = vst [vmem:[#allocation2 + $0x28] sm:$0xff] 0.0
    %28 = vst [vmem:[#allocation2 + $0x30] sm:$0xff] 0.0
    %29 = vst [vmem:[#allocation2 + $0x38] sm:$0xff] 0.0
    %30 = vst [vmem:[#allocation2 + $0x40] sm:$0xff] 0.0
    %31 = vst [vmem:[#allocation2 + $0x48] sm:$0xff] 0.0
    %32 = vst [vmem:[#allocation2 + $0x50] sm:$0xff] 0.0
    %33 = vst [vmem:[#allocation2 + $0x58] sm:$0xff] 0.0
    %34 = vst [vmem:[#allocation2 + $0x60] sm:$0xff] 0.0
    %35 = vst [vmem:[#allocation2 + $0x68] sm:$0xff] 0.0
    %36 = vst [vmem:[#allocation2 + $0x70] sm:$0xff] 0.0
    %37 = vst [vmem:[#allocation2 + $0x78] sm:$0xff] 0.0
  $region21: #{gconv_forward.5} parent=0 // pred_fallthru
    _
  %v38 = vld [vmem:[%s1] sm:$0xf]
  %v39 = vld [vmem:[%s1 + $0x4] sm:$0xf]
  %v40 = vld [vmem:[%s1 + $0x8] sm:$0xf]
  %v41 = vld [vmem:[%s1 + $0xc] sm:$0xf]
  %v42 = vld [vmem:[%s1 + $0x10] sm:$0xf]
  %v43 = vld [vmem:[%s1 + $0x14] sm:$0xf]
  %v44 = vld [vmem:[%s1 + $0x18] sm:$0xf]
  %v45 = vld [vmem:[%s1 + $0x1c] sm:$0xf]
  %v46 = vld [vmem:[%s1 + $0x20] sm:$0xf]
  %v47 = vld [vmem:[%s1 + $0x24] sm:$0xf]
  %v48 = vld [vmem:[%s1 + $0x28] sm:$0xf]
  %v49 = vld [vmem:[%s1 + $0x2c] sm:$0xf]
  %v50 = vld [vmem:[%s1 + $0x30] sm:$0xf]
  %v51 = vld [vmem:[%s1 + $0x34] sm:$0xf]
  %v52 = vld [vmem:[%s1 + $0x38] sm:$0xf]
  %v53 = vld [vmem:[%s1 + $0x3c] sm:$0xf]
  %v54 = vld [vmem:[#allocation2] sm:$0xff]
  %v55 = vld [vmem:[#allocation2 + $0x8] sm:$0xff]
  %v56 = vld [vmem:[#allocation2 + $0x10] sm:$0xff]
  %v57 = vld [vmem:[#allocation2 + $0x18] sm:$0xff]
  %v58 = vld [vmem:[#allocation2 + $0x20] sm:$0xff]
  %v59 = vld [vmem:[#allocation2 + $0x28] sm:$0xff]
  %v60 = vld [vmem:[#allocation2 + $0x30] sm:$0xff]
  %v61 = vld [vmem:[#allocation2 + $0x38] sm:$0xff]
  %v62 = vld [vmem:[#allocation2 + $0x40] sm:$0xff]
  %v63 = vld [vmem:[#allocation2 + $0x48] sm:$0xff]
  %v64 = vld [vmem:[#allocation2 + $0x50] sm:$0xff]
  %v65 = vld [vmem:[#allocation2 + $0x58] sm:$0xff]
  %v66 = vld [vmem:[#allocation2 + $0x60] sm:$0xff]
  %v67 = vld [vmem:[#allocation2 + $0x68] sm:$0xff]
  %v68 = vld [vmem:[#allocation2 + $0x70] sm:$0xff]
  %v69 = vld [vmem:[#allocation2 + $0x78] sm:$0xff]
  %v70 = vld [vmem:[%s0] sm:$0xf]
  %v71 = vld [vmem:[%s0 + $0x4] sm:$0xf]
  %v72 = vld [vmem:[%s0 + $0x8] sm:$0xf]
  %v73 = vld [vmem:[%s0 + $0xc] sm:$0xf]
  %v74 = vld [vmem:[%s0 + $0x10] sm:$0xf]
  %v75 = vld [vmem:[%s0 + $0x14] sm:$0xf]
  %v76 = vld [vmem:[%s0 + $0x18] sm:$0xf]
  %v77 = vld [vmem:[%s0 + $0x1c] sm:$0xf]
  %v78 = vld [vmem:[%s0 + $0x20] sm:$0xf]
  %v79 = vld [vmem:[%s0 + $0x24] sm:$0xf]
  %v80 = vld [vmem:[%s0 + $0x28] sm:$0xf]
  %v81 = vld [vmem:[%s0 + $0x2c] sm:$0xf]
  %v82 = vld [vmem:[%s0 + $0x30] sm:$0xf]
  %v83 = vld [vmem:[%s0 + $0x34] sm:$0xf]
  %v84 = vld [vmem:[%s0 + $0x38] sm:$0xf]
  %v85 = vld [vmem:[%s0 + $0x3c] sm:$0xf]
  %v102 = vunpack.c.l.b16 %v70
  %v103 = vunpack.c.l.b16 %v71
  %v104 = vunpack.c.l.b16 %v72
  %v105 = vunpack.c.l.b16 %v73
  %v106 = vunpack.c.l.b16 %v74
  %v107 = vunpack.c.l.b16 %v75
  %v108 = vunpack.c.l.b16 %v76
  %v109 = vunpack.c.l.b16 %v77
  %v110 = vunpack.c.l.b16 %v78
  %v111 = vunpack.c.l.b16 %v79
  %v112 = vunpack.c.l.b16 %v80
  %v113 = vunpack.c.l.b16 %v81
  %v114 = vunpack.c.l.b16 %v82
  %v115 = vunpack.c.l.b16 %v83
  %v116 = vunpack.c.l.b16 %v84
  %v117 = vunpack.c.l.b16 %v85
  %v118 = vpack.c.b16 %v103, %v102
  %v119 = vpack.c.b16 %v105, %v104
  %v120 = vpack.c.b16 %v107, %v106
  %v121 = vpack.c.b16 %v109, %v108
  %v122 = vpack.c.b16 %v111, %v110
  %v123 = vpack.c.b16 %v113, %v112
  %v124 = vpack.c.b16 %v115, %v114
  %v125 = vpack.c.b16 %v117, %v116
  %v150 = vunpack.c.l.b16 %v38
  %v151 = vunpack.c.l.b16 %v39
  %v152 = vunpack.c.l.b16 %v40
  %v153 = vunpack.c.l.b16 %v41
  %v154 = vunpack.c.l.b16 %v42
  %v155 = vunpack.c.l.b16 %v43
  %v156 = vunpack.c.l.b16 %v44
  %v157 = vunpack.c.l.b16 %v45
  %v158 = vunpack.c.l.b16 %v46
  %v159 = vunpack.c.l.b16 %v47
  %v160 = vunpack.c.l.b16 %v48
  %v161 = vunpack.c.l.b16 %v49
  %v162 = vunpack.c.l.b16 %v50
  %v163 = vunpack.c.l.b16 %v51
  %v164 = vunpack.c.l.b16 %v52
  %v165 = vunpack.c.l.b16 %v53
  %v166 = vpack.c.b16 %v151, %v150
  %v167 = vpack.c.b16 %v153, %v152
  %v168 = vpack.c.b16 %v155, %v154
  %v169 = vpack.c.b16 %v157, %v156
  %v170 = vpack.c.b16 %v159, %v158
  %v171 = vpack.c.b16 %v161, %v160
  %v172 = vpack.c.b16 %v163, %v162
  %v173 = vpack.c.b16 %v165, %v164
  %182 = vmatprep.subr.bf16.mxu0 0
  %183 = vmatpush1.bf16.msra.mxu0 %v173
  %184 = vmatprep.subr.bf16.mxu0 0
  %185 = vmatpush1.bf16.msra.mxu0 %v172
  %186 = vmatprep.subr.bf16.mxu0 0
  %187 = vmatpush1.bf16.msra.mxu0 %v171
  %188 = vmatprep.subr.bf16.mxu0 0
  %189 = vmatpush1.bf16.msra.mxu0 %v170
  %190 = vmatprep.subr.bf16.mxu0 0
  %191 = vmatpush1.bf16.msra.mxu0 %v169
  %192 = vmatprep.subr.bf16.mxu0 0
  %193 = vmatpush1.bf16.msra.mxu0 %v168
  %194 = vmatprep.subr.bf16.mxu0 0
  %195 = vmatpush1.bf16.msra.mxu0 %v167
  %196 = vmatprep.subr.bf16.mxu0 0
  %197 = vmatpush1.bf16.msra.mxu0 %v166
  %198 = vmatprep.subr.bf16.mxu0 0
  %199 = vmatpush2.bf16.msra.mxu0 0
  %200 = vmatprep.subr.bf16.mxu0 0
  %201 = vmatpush2.bf16.msra.mxu0 0
  %202 = vmatprep.subr.bf16.mxu0 0
  %203 = vmatpush2.bf16.msra.mxu0 0
  %204 = vmatprep.subr.bf16.mxu0 0
  %205 = vmatpush2.bf16.msra.mxu0 0
  %206 = vmatprep.subr.bf16.mxu0 0
  %207 = vmatpush2.bf16.msra.mxu0 0
  %208 = vmatprep.subr.bf16.mxu0 0
  %209 = vmatpush2.bf16.msra.mxu0 0
  %210 = vmatprep.subr.bf16.mxu0 0
  %211 = vmatpush2.bf16.msra.mxu0 0
  %212 = vmatprep.subr.bf16.mxu0 0
  %213 = vmatpush2.bf16.msra.mxu0 0
  %214 = vmatprep.mubr.bf16.mxu0 0
  %215 = vmatmul.mubr.bf16.gmra.mxu0 %v118
  %v216 = vpop.f32.mrf.mxu0
  %v217 = vadd.f32 0.0, %v216
  %v218 = vpop.f32.mrf.mxu0
  %v219 = vpop.f32.mrf.mxu0
  %v220 = vadd.f32 0.0, %v219
  %v221 = vpop.f32.mrf.mxu0
  %222 = vmatprep.mubr.bf16.mxu0 0
  %223 = vmatmul.mubr.bf16.gmra.mxu0 %v119
  %v224 = vpop.f32.mrf.mxu0
  %v225 = vadd.f32 0.0, %v224
  %v226 = vpop.f32.mrf.mxu0
  %v227 = vpop.f32.mrf.mxu0
  %v228 = vadd.f32 0.0, %v227
  %v229 = vpop.f32.mrf.mxu0
  %230 = vmatprep.mubr.bf16.mxu0 0
  %231 = vmatmul.mubr.bf16.gmra.mxu0 %v120
  %v232 = vpop.f32.mrf.mxu0
  %v233 = vadd.f32 0.0, %v232
  %v234 = vpop.f32.mrf.mxu0
  %v235 = vpop.f32.mrf.mxu0
  %v236 = vadd.f32 0.0, %v235
  %v237 = vpop.f32.mrf.mxu0
  %238 = vmatprep.mubr.bf16.mxu0 0
  %239 = vmatmul.mubr.bf16.gmra.mxu0 %v121
  %v240 = vpop.f32.mrf.mxu0
  %v241 = vadd.f32 0.0, %v240
  %v242 = vpop.f32.mrf.mxu0
  %v243 = vpop.f32.mrf.mxu0
  %v244 = vadd.f32 0.0, %v243
  %v245 = vpop.f32.mrf.mxu0
  %246 = vmatprep.mubr.bf16.mxu0 0
  %247 = vmatmul.mubr.bf16.gmra.mxu0 %v122
  %v248 = vpop.f32.mrf.mxu0
  %v249 = vadd.f32 0.0, %v248
  %v250 = vpop.f32.mrf.mxu0
  %v251 = vpop.f32.mrf.mxu0
  %v252 = vadd.f32 0.0, %v251
  %v253 = vpop.f32.mrf.mxu0
  %254 = vmatprep.mubr.bf16.mxu0 0
  %255 = vmatmul.mubr.bf16.gmra.mxu0 %v123
  %v256 = vpop.f32.mrf.mxu0
  %v257 = vadd.f32 0.0, %v256
  %v258 = vpop.f32.mrf.mxu0
  %v259 = vpop.f32.mrf.mxu0
  %v260 = vadd.f32 0.0, %v259
  %v261 = vpop.f32.mrf.mxu0
  %262 = vmatprep.mubr.bf16.mxu0 0
  %263 = vmatmul.mubr.bf16.gmra.mxu0 %v124
  %v264 = vpop.f32.mrf.mxu0
  %v265 = vadd.f32 0.0, %v264
  %v266 = vpop.f32.mrf.mxu0
  %v267 = vpop.f32.mrf.mxu0
  %v268 = vadd.f32 0.0, %v267
  %v269 = vpop.f32.mrf.mxu0
  %270 = vmatprep.mubr.bf16.mxu0 0
  %271 = vmatmul.mubr.bf16.gmra.mxu0 %v125
  %v272 = vpop.f32.mrf.mxu0
  %v273 = vadd.f32 0.0, %v272
  %v274 = vpop.f32.mrf.mxu0
  %v275 = vpop.f32.mrf.mxu0
  %v276 = vadd.f32 0.0, %v275
  %v277 = vpop.f32.mrf.mxu0
  %278 = vdwg.mxu0
  %v279 = vadd.f32 %v54, %v217
  %v280 = vadd.f32 %v55, %v220
  %v281 = vadd.f32 %v56, %v225
  %v282 = vadd.f32 %v57, %v228
  %v283 = vadd.f32 %v58, %v233
  %v284 = vadd.f32 %v59, %v236
  %v285 = vadd.f32 %v60, %v241
  %v286 = vadd.f32 %v61, %v244
  %v287 = vadd.f32 %v62, %v249
  %v288 = vadd.f32 %v63, %v252
  %v289 = vadd.f32 %v64, %v257
  %v290 = vadd.f32 %v65, %v260
  %v291 = vadd.f32 %v66, %v265
  %v292 = vadd.f32 %v67, %v268
  %v293 = vadd.f32 %v68, %v273
  %v294 = vadd.f32 %v69, %v276
  %295 = vst [vmem:[#allocation2] sm:$0xff] %v279
  %296 = vst [vmem:[#allocation2 + $0x8] sm:$0xff] %v280
  %297 = vst [vmem:[#allocation2 + $0x10] sm:$0xff] %v281
  %298 = vst [vmem:[#allocation2 + $0x18] sm:$0xff] %v282
  %299 = vst [vmem:[#allocation2 + $0x20] sm:$0xff] %v283
  %300 = vst [vmem:[#allocation2 + $0x28] sm:$0xff] %v284
  %301 = vst [vmem:[#allocation2 + $0x30] sm:$0xff] %v285
  %302 = vst [vmem:[#allocation2 + $0x38] sm:$0xff] %v286
  %303 = vst [vmem:[#allocation2 + $0x40] sm:$0xff] %v287
  %304 = vst [vmem:[#allocation2 + $0x48] sm:$0xff] %v288
  %305 = vst [vmem:[#allocation2 + $0x50] sm:$0xff] %v289
  %306 = vst [vmem:[#allocation2 + $0x58] sm:$0xff] %v290
  %307 = vst [vmem:[#allocation2 + $0x60] sm:$0xff] %v291
  %308 = vst [vmem:[#allocation2 + $0x68] sm:$0xff] %v292
  %309 = vst [vmem:[#allocation2 + $0x70] sm:$0xff] %v293
  %310 = vst [vmem:[#allocation2 + $0x78] sm:$0xff] %v294
  // Predicated region
  $region22: #{gconv_forward.5} parent=0 // pred_check
    %p311 = pneg %p18
  $region23: #{gconv_forward.5} parent=0 // pred_check_branch
    %313 = sbr.rel (%p311) target = $region25
  $region24: #{gconv_forward.5} parent=0 // pred_region
    %v314 = vld [vmem:[#allocation2] sm:$0xff]
    %v315 = vld [vmem:[#allocation2 + $0x8] sm:$0xff]
    %v316 = vld [vmem:[#allocation2 + $0x10] sm:$0xff]
    %v317 = vld [vmem:[#allocation2 + $0x18] sm:$0xff]
    %v318 = vld [vmem:[#allocation2 + $0x20] sm:$0xff]
    %v319 = vld [vmem:[#allocation2 + $0x28] sm:$0xff]
    %v320 = vld [vmem:[#allocation2 + $0x30] sm:$0xff]
    %v321 = vld [vmem:[#allocation2 + $0x38] sm:$0xff]
    %v322 = vld [vmem:[#allocation2 + $0x40] sm:$0xff]
    %v323 = vld [vmem:[#allocation2 + $0x48] sm:$0xff]
    %v324 = vld [vmem:[#allocation2 + $0x50] sm:$0xff]
    %v325 = vld [vmem:[#allocation2 + $0x58] sm:$0xff]
    %v326 = vld [vmem:[#allocation2 + $0x60] sm:$0xff]
    %v327 = vld [vmem:[#allocation2 + $0x68] sm:$0xff]
    %v328 = vld [vmem:[#allocation2 + $0x70] sm:$0xff]
    %v329 = vld [vmem:[#allocation2 + $0x78] sm:$0xff]
    %v330 = vld [vmem:[%s2] sm:$0x1]
    %v332 = vlaneseq
    %v333 = vshrl.u32 %v332, 7
    %v334 = vsub.s32 0, %v333
    %v335 = vrot.slane %v330, %v334
    %v337 = vadd.f32 %v314, %v335
    %v338 = vadd.f32 %v315, %v335
    %v339 = vadd.f32 %v316, %v335
    %v340 = vadd.f32 %v317, %v335
    %v341 = vadd.f32 %v318, %v335
    %v342 = vadd.f32 %v319, %v335
    %v343 = vadd.f32 %v320, %v335
    %v344 = vadd.f32 %v321, %v335
    %v345 = vadd.f32 %v322, %v335
    %v346 = vadd.f32 %v323, %v335
    %v347 = vadd.f32 %v324, %v335
    %v348 = vadd.f32 %v325, %v335
    %v349 = vadd.f32 %v326, %v335
    %v350 = vadd.f32 %v327, %v335
    %v351 = vadd.f32 %v328, %v335
    %v352 = vadd.f32 %v329, %v335
    %vm353 = vcmp.gt.f32.partialorder %v337, 0.0
    %vm354 = vcmp.gt.f32.partialorder %v338, 0.0
    %vm355 = vcmp.gt.f32.partialorder %v339, 0.0
    %vm356 = vcmp.gt.f32.partialorder %v340, 0.0
    %vm357 = vcmp.gt.f32.partialorder %v341, 0.0
    %vm358 = vcmp.gt.f32.partialorder %v342, 0.0
    %vm359 = vcmp.gt.f32.partialorder %v343, 0.0
    %vm360 = vcmp.gt.f32.partialorder %v344, 0.0
    %vm361 = vcmp.gt.f32.partialorder %v345, 0.0
    %vm362 = vcmp.gt.f32.partialorder %v346, 0.0
    %vm363 = vcmp.gt.f32.partialorder %v347, 0.0
    %vm364 = vcmp.gt.f32.partialorder %v348, 0.0
    %vm365 = vcmp.gt.f32.partialorder %v349, 0.0
    %vm366 = vcmp.gt.f32.partialorder %v350, 0.0
    %vm367 = vcmp.gt.f32.partialorder %v351, 0.0
    %vm368 = vcmp.gt.f32.partialorder %v352, 0.0
    %v369 = vld [vmem:[%s3] sm:$0x1]
    %v371 = vlaneseq
    %v372 = vshrl.u32 %v371, 7
    %v373 = vsub.s32 0, %v372
    %v374 = vrot.slane %v369, %v373
    %v376 = vmul.f32 %v374, %v337
    %v377 = vmul.f32 %v374, %v338
    %v378 = vmul.f32 %v374, %v339
    %v379 = vmul.f32 %v374, %v340
    %v380 = vmul.f32 %v374, %v341
    %v381 = vmul.f32 %v374, %v342
    %v382 = vmul.f32 %v374, %v343
    %v383 = vmul.f32 %v374, %v344
    %v384 = vmul.f32 %v374, %v345
    %v385 = vmul.f32 %v374, %v346
    %v386 = vmul.f32 %v374, %v347
    %v387 = vmul.f32 %v374, %v348
    %v388 = vmul.f32 %v374, %v349
    %v389 = vmul.f32 %v374, %v350
    %v390 = vmul.f32 %v374, %v351
    %v391 = vmul.f32 %v374, %v352
    %v392 = vsel %vm353, %v337, %v376
    %v393 = vsel %vm354, %v338, %v377
    %v394 = vsel %vm355, %v339, %v378
    %v395 = vsel %vm356, %v340, %v379
    %v396 = vsel %vm357, %v341, %v380
    %v397 = vsel %vm358, %v342, %v381
    %v398 = vsel %vm359, %v343, %v382
    %v399 = vsel %vm360, %v344, %v383
    %v400 = vsel %vm361, %v345, %v384
    %v401 = vsel %vm362, %v346, %v385
    %v402 = vsel %vm363, %v347, %v386
    %v403 = vsel %vm364, %v348, %v387
    %v404 = vsel %vm365, %v349, %v388
    %v405 = vsel %vm366, %v350, %v389
    %v406 = vsel %vm367, %v351, %v390
    %v407 = vsel %vm368, %v352, %v391
    %v408 = vpack.c.bf16 %v393, %v392
    %v409 = vpack.c.bf16 %v395, %v394
    %v410 = vpack.c.bf16 %v397, %v396
    %v411 = vpack.c.bf16 %v399, %v398
    %v412 = vpack.c.bf16 %v401, %v400
    %v413 = vpack.c.bf16 %v403, %v402
    %v414 = vpack.c.bf16 %v405, %v404
    %v415 = vpack.c.bf16 %v407, %v406
    %v424 = vunpack.c.l.b16 %v408
    %v425 = vunpack.c.h.b16 %v408
    %v426 = vunpack.c.l.b16 %v409
    %v427 = vunpack.c.h.b16 %v409
    %v428 = vunpack.c.l.b16 %v410
    %v429 = vunpack.c.h.b16 %v410
    %v430 = vunpack.c.l.b16 %v411
    %v431 = vunpack.c.h.b16 %v411
    %v432 = vunpack.c.l.b16 %v412
    %v433 = vunpack.c.h.b16 %v412
    %v434 = vunpack.c.l.b16 %v413
    %v435 = vunpack.c.h.b16 %v413
    %v436 = vunpack.c.l.b16 %v414
    %v437 = vunpack.c.h.b16 %v414
    %v438 = vunpack.c.l.b16 %v415
    %v439 = vunpack.c.h.b16 %v415
    %v440 = vpack.c.b16 %v424, %v424
    %v441 = vpack.c.b16 %v425, %v425
    %v442 = vpack.c.b16 %v426, %v426
    %v443 = vpack.c.b16 %v427, %v427
    %v444 = vpack.c.b16 %v428, %v428
    %v445 = vpack.c.b16 %v429, %v429
    %v446 = vpack.c.b16 %v430, %v430
    %v447 = vpack.c.b16 %v431, %v431
    %v448 = vpack.c.b16 %v432, %v432
    %v449 = vpack.c.b16 %v433, %v433
    %v450 = vpack.c.b16 %v434, %v434
    %v451 = vpack.c.b16 %v435, %v435
    %v452 = vpack.c.b16 %v436, %v436
    %v453 = vpack.c.b16 %v437, %v437
    %v454 = vpack.c.b16 %v438, %v438
    %v455 = vpack.c.b16 %v439, %v439
    %472 = vst [vmem:[%s4] sm:$0xf] %v440
    %473 = vst [vmem:[%s4 + $0x4] sm:$0xf] %v441
    %474 = vst [vmem:[%s4 + $0x8] sm:$0xf] %v442
    %475 = vst [vmem:[%s4 + $0xc] sm:$0xf] %v443
    %476 = vst [vmem:[%s4 + $0x10] sm:$0xf] %v444
    %477 = vst [vmem:[%s4 + $0x14] sm:$0xf] %v445
    %478 = vst [vmem:[%s4 + $0x18] sm:$0xf] %v446
    %479 = vst [vmem:[%s4 + $0x1c] sm:$0xf] %v447
    %480 = vst [vmem:[%s4 + $0x20] sm:$0xf] %v448
    %481 = vst [vmem:[%s4 + $0x24] sm:$0xf] %v449
    %482 = vst [vmem:[%s4 + $0x28] sm:$0xf] %v450
    %483 = vst [vmem:[%s4 + $0x2c] sm:$0xf] %v451
    %484 = vst [vmem:[%s4 + $0x30] sm:$0xf] %v452
    %485 = vst [vmem:[%s4 + $0x34] sm:$0xf] %v453
    %486 = vst [vmem:[%s4 + $0x38] sm:$0xf] %v454
    %487 = vst [vmem:[%s4 + $0x3c] sm:$0xf] %v455
  $region25: #{gconv_forward.5} parent=0 // pred_fallthru
    _
  // Predicated region
  $region26: #{gconv_forward.5} parent=0 // pred_check
    _
  $region27: #{gconv_forward.5} parent=0 // pred_check_branch
    %489 = sbr.rel (0) target = $region29
  $region28: #{gconv_forward.5} parent=0 // pred_region
    _
  $region29: #{gconv_forward.5} parent=0 // pred_fallthru
    _
  // Predicated region
  $region30: #{gconv_forward.5} parent=0 // pred_check
    _
  $region31: #{gconv_forward.5} parent=0 // pred_check_branch
    %491 = sbr.rel (0) target = $region33
  $region32: #{gconv_forward.5} parent=0 // pred_region
    _
  $region33: #{gconv_forward.5} parent=0 // pred_fallthru
    _

// kernel: gconv_forward.7
$region0: #{gconv_forward.7}
  #allocation0 [shape = 'u32[]', space=smem, size = 0x4, offset = 0x4, fixed_abs, tag = 'smem constant byte address 0x4 - core index']
  #allocation1 [shape = 'u32[144,128]{1,0:T(1,128)}', space=vmem, size = 0x12000, scoped, tag = 'internal scratch']
  #allocation2 [shape = 'f32[128,128]{1,0:T(8,128)}', space=vmem, size = 0x10000, scoped, tag = 'scratch operand']
  %s0 = inlined_call_operand.vmem [shape: bf16[128,128], index: 0, kind: input, shape index: {}]
  %s1 = inlined_call_operand.vmem [shape: bf16[128,128], index: 1, kind: input, shape index: {}]
  %s2 = inlined_call_operand.vmem [shape: f32[1,128], index: 2, kind: input, shape index: {}]
  %s3 = inlined_call_operand.vmem [shape: f32[1,128], index: 3, kind: input, shape index: {}]
  %s4 = inlined_call_operand.vmem [shape: f32[128,128], index: 4, kind: output, shape index: {}]
  %s5 = sld [smem:[#allocation0]]
  $region34: #{gconv_forward.7} parent=0
    _
  %s7 = ssub.s32 1, %s5
  %s8 = scalar_select 0, %s7, %s5
  // Predicated region
  $region2: #{gconv_forward.7} parent=0 // pred_check
    _
  $region3: #{gconv_forward.7} parent=0 // pred_check_branch
    %10 = sbr.rel (0) target = $region5
  $region4: #{gconv_forward.7} parent=0 // pred_region
    _
  $region5: #{gconv_forward.7} parent=0 // pred_fallthru
    _
  // Predicated region
  $region6: #{gconv_forward.7} parent=0 // pred_check
    _
  $region7: #{gconv_forward.7} parent=0 // pred_check_branch
    %12 = sbr.rel (0) target = $region9
  $region8: #{gconv_forward.7} parent=0 // pred_region
    _
  $region9: #{gconv_forward.7} parent=0 // pred_fallthru
    _
  // Predicated region
  $region10: #{gconv_forward.7} parent=0 // pred_check
    _
  $region11: #{gconv_forward.7} parent=0 // pred_check_branch
    %14 = sbr.rel (0) target = $region13
  $region12: #{gconv_forward.7} parent=0 // pred_region
    _
  $region13: #{gconv_forward.7} parent=0 // pred_fallthru
    _
  // Predicated region
  $region14: #{gconv_forward.7} parent=0 // pred_check
    _
  $region15: #{gconv_forward.7} parent=0 // pred_check_branch
    %16 = sbr.rel (0) target = $region17
  $region16: #{gconv_forward.7} parent=0 // pred_region
    _
  $region17: #{gconv_forward.7} parent=0 // pred_fallthru
    _
  %p18 = scmp.eq.s32.totalorder 0, 0
  // Predicated region
  $region18: #{gconv_forward.7} parent=0 // pred_check
    %p19 = pneg %p18
  $region19: #{gconv_forward.7} parent=0 // pred_check_branch
    %21 = sbr.rel (%p19) target = $region21
  $region20: #{gconv_forward.7} parent=0 // pred_region
    %22 = vst [vmem:[#allocation2] sm:$0xff] 0.0
    %23 = vst [vmem:[#allocation2 + $0x8] sm:$0xff] 0.0
    %24 = vst [vmem:[#allocation2 + $0x10] sm:$0xff] 0.0
    %25 = vst [vmem:[#allocation2 + $0x18] sm:$0xff] 0.0
    %26 = vst [vmem:[#allocation2 + $0x20] sm:$0xff] 0.0
    %27 = vst [vmem:[#allocation2 + $0x28] sm:$0xff] 0.0
    %28 = vst [vmem:[#allocation2 + $0x30] sm:$0xff] 0.0
    %29 = vst [vmem:[#allocation2 + $0x38] sm:$0xff] 0.0
    %30 = vst [vmem:[#allocation2 + $0x40] sm:$0xff] 0.0
    %31 = vst [vmem:[#allocation2 + $0x48] sm:$0xff] 0.0
    %32 = vst [vmem:[#allocation2 + $0x50] sm:$0xff] 0.0
    %33 = vst [vmem:[#allocation2 + $0x58] sm:$0xff] 0.0
    %34 = vst [vmem:[#allocation2 + $0x60] sm:$0xff] 0.0
    %35 = vst [vmem:[#allocation2 + $0x68] sm:$0xff] 0.0
    %36 = vst [vmem:[#allocation2 + $0x70] sm:$0xff] 0.0
    %37 = vst [vmem:[#allocation2 + $0x78] sm:$0xff] 0.0
  $region21: #{gconv_forward.7} parent=0 // pred_fallthru
    _
  %v38 = vld [vmem:[%s1] sm:$0xf]
  %v39 = vld [vmem:[%s1 + $0x4] sm:$0xf]
  %v40 = vld [vmem:[%s1 + $0x8] sm:$0xf]
  %v41 = vld [vmem:[%s1 + $0xc] sm:$0xf]
  %v42 = vld [vmem:[%s1 + $0x10] sm:$0xf]
  %v43 = vld [vmem:[%s1 + $0x14] sm:$0xf]
  %v44 = vld [vmem:[%s1 + $0x18] sm:$0xf]
  %v45 = vld [vmem:[%s1 + $0x1c] sm:$0xf]
  %v46 = vld [vmem:[%s1 + $0x20] sm:$0xf]
  %v47 = vld [vmem:[%s1 + $0x24] sm:$0xf]
  %v48 = vld [vmem:[%s1 + $0x28] sm:$0xf]
  %v49 = vld [vmem:[%s1 + $0x2c] sm:$0xf]
  %v50 = vld [vmem:[%s1 + $0x30] sm:$0xf]
  %v51 = vld [vmem:[%s1 + $0x34] sm:$0xf]
  %v52 = vld [vmem:[%s1 + $0x38] sm:$0xf]
  %v53 = vld [vmem:[%s1 + $0x3c] sm:$0xf]
  %v54 = vld [vmem:[#allocation2] sm:$0xff]
  %v55 = vld [vmem:[#allocation2 + $0x8] sm:$0xff]
  %v56 = vld [vmem:[#allocation2 + $0x10] sm:$0xff]
  %v57 = vld [vmem:[#allocation2 + $0x18] sm:$0xff]
  %v58 = vld [vmem:[#allocation2 + $0x20] sm:$0xff]
  %v59 = vld [vmem:[#allocation2 + $0x28] sm:$0xff]
  %v60 = vld [vmem:[#allocation2 + $0x30] sm:$0xff]
  %v61 = vld [vmem:[#allocation2 + $0x38] sm:$0xff]
  %v62 = vld [vmem:[#allocation2 + $0x40] sm:$0xff]
  %v63 = vld [vmem:[#allocation2 + $0x48] sm:$0xff]
  %v64 = vld [vmem:[#allocation2 + $0x50] sm:$0xff]
  %v65 = vld [vmem:[#allocation2 + $0x58] sm:$0xff]
  %v66 = vld [vmem:[#allocation2 + $0x60] sm:$0xff]
  %v67 = vld [vmem:[#allocation2 + $0x68] sm:$0xff]
  %v68 = vld [vmem:[#allocation2 + $0x70] sm:$0xff]
  %v69 = vld [vmem:[#allocation2 + $0x78] sm:$0xff]
  %v70 = vld [vmem:[%s0] sm:$0xf]
  %v71 = vld [vmem:[%s0 + $0x4] sm:$0xf]
  %v72 = vld [vmem:[%s0 + $0x8] sm:$0xf]
  %v73 = vld [vmem:[%s0 + $0xc] sm:$0xf]
  %v74 = vld [vmem:[%s0 + $0x10] sm:$0xf]
  %v75 = vld [vmem:[%s0 + $0x14] sm:$0xf]
  %v76 = vld [vmem:[%s0 + $0x18] sm:$0xf]
  %v77 = vld [vmem:[%s0 + $0x1c] sm:$0xf]
  %v78 = vld [vmem:[%s0 + $0x20] sm:$0xf]
  %v79 = vld [vmem:[%s0 + $0x24] sm:$0xf]
  %v80 = vld [vmem:[%s0 + $0x28] sm:$0xf]
  %v81 = vld [vmem:[%s0 + $0x2c] sm:$0xf]
  %v82 = vld [vmem:[%s0 + $0x30] sm:$0xf]
  %v83 = vld [vmem:[%s0 + $0x34] sm:$0xf]
  %v84 = vld [vmem:[%s0 + $0x38] sm:$0xf]
  %v85 = vld [vmem:[%s0 + $0x3c] sm:$0xf]
  %v102 = vunpack.c.l.b16 %v70
  %v103 = vunpack.c.l.b16 %v71
  %v104 = vunpack.c.l.b16 %v72
  %v105 = vunpack.c.l.b16 %v73
  %v106 = vunpack.c.l.b16 %v74
  %v107 = vunpack.c.l.b16 %v75
  %v108 = vunpack.c.l.b16 %v76
  %v109 = vunpack.c.l.b16 %v77
  %v110 = vunpack.c.l.b16 %v78
  %v111 = vunpack.c.l.b16 %v79
  %v112 = vunpack.c.l.b16 %v80
  %v113 = vunpack.c.l.b16 %v81
  %v114 = vunpack.c.l.b16 %v82
  %v115 = vunpack.c.l.b16 %v83
  %v116 = vunpack.c.l.b16 %v84
  %v117 = vunpack.c.l.b16 %v85
  %v118 = vpack.c.b16 %v103, %v102
  %v119 = vpack.c.b16 %v105, %v104
  %v120 = vpack.c.b16 %v107, %v106
  %v121 = vpack.c.b16 %v109, %v108
  %v122 = vpack.c.b16 %v111, %v110
  %v123 = vpack.c.b16 %v113, %v112
  %v124 = vpack.c.b16 %v115, %v114
  %v125 = vpack.c.b16 %v117, %v116
  %v150 = vunpack.c.l.b16 %v38
  %v151 = vunpack.c.l.b16 %v39
  %v152 = vunpack.c.l.b16 %v40
  %v153 = vunpack.c.l.b16 %v41
  %v154 = vunpack.c.l.b16 %v42
  %v155 = vunpack.c.l.b16 %v43
  %v156 = vunpack.c.l.b16 %v44
  %v157 = vunpack.c.l.b16 %v45
  %v158 = vunpack.c.l.b16 %v46
  %v159 = vunpack.c.l.b16 %v47
  %v160 = vunpack.c.l.b16 %v48
  %v161 = vunpack.c.l.b16 %v49
  %v162 = vunpack.c.l.b16 %v50
  %v163 = vunpack.c.l.b16 %v51
  %v164 = vunpack.c.l.b16 %v52
  %v165 = vunpack.c.l.b16 %v53
  %v166 = vpack.c.b16 %v151, %v150
  %v167 = vpack.c.b16 %v153, %v152
  %v168 = vpack.c.b16 %v155, %v154
  %v169 = vpack.c.b16 %v157, %v156
  %v170 = vpack.c.b16 %v159, %v158
  %v171 = vpack.c.b16 %v161, %v160
  %v172 = vpack.c.b16 %v163, %v162
  %v173 = vpack.c.b16 %v165, %v164
  %182 = vmatprep.subr.bf16.mxu0 0
  %183 = vmatpush1.bf16.msra.mxu0 %v173
  %184 = vmatprep.subr.bf16.mxu0 0
  %185 = vmatpush1.bf16.msra.mxu0 %v172
  %186 = vmatprep.subr.bf16.mxu0 0
  %187 = vmatpush1.bf16.msra.mxu0 %v171
  %188 = vmatprep.subr.bf16.mxu0 0
  %189 = vmatpush1.bf16.msra.mxu0 %v170
  %190 = vmatprep.subr.bf16.mxu0 0
  %191 = vmatpush1.bf16.msra.mxu0 %v169
  %192 = vmatprep.subr.bf16.mxu0 0
  %193 = vmatpush1.bf16.msra.mxu0 %v168
  %194 = vmatprep.subr.bf16.mxu0 0
  %195 = vmatpush1.bf16.msra.mxu0 %v167
  %196 = vmatprep.subr.bf16.mxu0 0
  %197 = vmatpush1.bf16.msra.mxu0 %v166
  %198 = vmatprep.subr.bf16.mxu0 0
  %199 = vmatpush2.bf16.msra.mxu0 0
  %200 = vmatprep.subr.bf16.mxu0 0
  %201 = vmatpush2.bf16.msra.mxu0 0
  %202 = vmatprep.subr.bf16.mxu0 0
  %203 = vmatpush2.bf16.msra.mxu0 0
  %204 = vmatprep.subr.bf16.mxu0 0
  %205 = vmatpush2.bf16.msra.mxu0 0
  %206 = vmatprep.subr.bf16.mxu0 0
  %207 = vmatpush2.bf16.msra.mxu0 0
  %208 = vmatprep.subr.bf16.mxu0 0
  %209 = vmatpush2.bf16.msra.mxu0 0
  %210 = vmatprep.subr.bf16.mxu0 0
  %211 = vmatpush2.bf16.msra.mxu0 0
  %212 = vmatprep.subr.bf16.mxu0 0
  %213 = vmatpush2.bf16.msra.mxu0 0
  %214 = vmatprep.mubr.bf16.mxu0 0
  %215 = vmatmul.mubr.bf16.gmra.mxu0 %v118
  %v216 = vpop.f32.mrf.mxu0
  %v217 = vadd.f32 0.0, %v216
  %v218 = vpop.f32.mrf.mxu0
  %v219 = vpop.f32.mrf.mxu0
  %v220 = vadd.f32 0.0, %v219
  %v221 = vpop.f32.mrf.mxu0
  %222 = vmatprep.mubr.bf16.mxu0 0
  %223 = vmatmul.mubr.bf16.gmra.mxu0 %v119
  %v224 = vpop.f32.mrf.mxu0
  %v225 = vadd.f32 0.0, %v224
  %v226 = vpop.f32.mrf.mxu0
  %v227 = vpop.f32.mrf.mxu0
  %v228 = vadd.f32 0.0, %v227
  %v229 = vpop.f32.mrf.mxu0
  %230 = vmatprep.mubr.bf16.mxu0 0
  %231 = vmatmul.mubr.bf16.gmra.mxu0 %v120
  %v232 = vpop.f32.mrf.mxu0
  %v233 = vadd.f32 0.0, %v232
  %v234 = vpop.f32.mrf.mxu0
  %v235 = vpop.f32.mrf.mxu0
  %v236 = vadd.f32 0.0, %v235
  %v237 = vpop.f32.mrf.mxu0
  %238 = vmatprep.mubr.bf16.mxu0 0
  %239 = vmatmul.mubr.bf16.gmra.mxu0 %v121
  %v240 = vpop.f32.mrf.mxu0
  %v241 = vadd.f32 0.0, %v240
  %v242 = vpop.f32.mrf.mxu0
  %v243 = vpop.f32.mrf.mxu0
  %v244 = vadd.f32 0.0, %v243
  %v245 = vpop.f32.mrf.mxu0
  %246 = vmatprep.mubr.bf16.mxu0 0
  %247 = vmatmul.mubr.bf16.gmra.mxu0 %v122
  %v248 = vpop.f32.mrf.mxu0
  %v249 = vadd.f32 0.0, %v248
  %v250 = vpop.f32.mrf.mxu0
  %v251 = vpop.f32.mrf.mxu0
  %v252 = vadd.f32 0.0, %v251
  %v253 = vpop.f32.mrf.mxu0
  %254 = vmatprep.mubr.bf16.mxu0 0
  %255 = vmatmul.mubr.bf16.gmra.mxu0 %v123
  %v256 = vpop.f32.mrf.mxu0
  %v257 = vadd.f32 0.0, %v256
  %v258 = vpop.f32.mrf.mxu0
  %v259 = vpop.f32.mrf.mxu0
  %v260 = vadd.f32 0.0, %v259
  %v261 = vpop.f32.mrf.mxu0
  %262 = vmatprep.mubr.bf16.mxu0 0
  %263 = vmatmul.mubr.bf16.gmra.mxu0 %v124
  %v264 = vpop.f32.mrf.mxu0
  %v265 = vadd.f32 0.0, %v264
  %v266 = vpop.f32.mrf.mxu0
  %v267 = vpop.f32.mrf.mxu0
  %v268 = vadd.f32 0.0, %v267
  %v269 = vpop.f32.mrf.mxu0
  %270 = vmatprep.mubr.bf16.mxu0 0
  %271 = vmatmul.mubr.bf16.gmra.mxu0 %v125
  %v272 = vpop.f32.mrf.mxu0
  %v273 = vadd.f32 0.0, %v272
  %v274 = vpop.f32.mrf.mxu0
  %v275 = vpop.f32.mrf.mxu0
  %v276 = vadd.f32 0.0, %v275
  %v277 = vpop.f32.mrf.mxu0
  %278 = vdwg.mxu0
  %v279 = vadd.f32 %v54, %v217
  %v280 = vadd.f32 %v55, %v220
  %v281 = vadd.f32 %v56, %v225
  %v282 = vadd.f32 %v57, %v228
  %v283 = vadd.f32 %v58, %v233
  %v284 = vadd.f32 %v59, %v236
  %v285 = vadd.f32 %v60, %v241
  %v286 = vadd.f32 %v61, %v244
  %v287 = vadd.f32 %v62, %v249
  %v288 = vadd.f32 %v63, %v252
  %v289 = vadd.f32 %v64, %v257
  %v290 = vadd.f32 %v65, %v260
  %v291 = vadd.f32 %v66, %v265
  %v292 = vadd.f32 %v67, %v268
  %v293 = vadd.f32 %v68, %v273
  %v294 = vadd.f32 %v69, %v276
  %295 = vst [vmem:[#allocation2] sm:$0xff] %v279
  %296 = vst [vmem:[#allocation2 + $0x8] sm:$0xff] %v280
  %297 = vst [vmem:[#allocation2 + $0x10] sm:$0xff] %v281
  %298 = vst [vmem:[#allocation2 + $0x18] sm:$0xff] %v282
  %299 = vst [vmem:[#allocation2 + $0x20] sm:$0xff] %v283
  %300 = vst [vmem:[#allocation2 + $0x28] sm:$0xff] %v284
  %301 = vst [vmem:[#allocation2 + $0x30] sm:$0xff] %v285
  %302 = vst [vmem:[#allocation2 + $0x38] sm:$0xff] %v286
  %303 = vst [vmem:[#allocation2 + $0x40] sm:$0xff] %v287
  %304 = vst [vmem:[#allocation2 + $0x48] sm:$0xff] %v288
  %305 = vst [vmem:[#allocation2 + $0x50] sm:$0xff] %v289
  %306 = vst [vmem:[#allocation2 + $0x58] sm:$0xff] %v290
  %307 = vst [vmem:[#allocation2 + $0x60] sm:$0xff] %v291
  %308 = vst [vmem:[#allocation2 + $0x68] sm:$0xff] %v292
  %309 = vst [vmem:[#allocation2 + $0x70] sm:$0xff] %v293
  %310 = vst [vmem:[#allocation2 + $0x78] sm:$0xff] %v294
  // Predicated region
  $region22: #{gconv_forward.7} parent=0 // pred_check
    %p311 = pneg %p18
  $region23: #{gconv_forward.7} parent=0 // pred_check_branch
    %313 = sbr.rel (%p311) target = $region25
  $region24: #{gconv_forward.7} parent=0 // pred_region
    %v314 = vld [vmem:[#allocation2] sm:$0xff]
    %v315 = vld [vmem:[#allocation2 + $0x8] sm:$0xff]
    %v316 = vld [vmem:[#allocation2 + $0x10] sm:$0xff]
    %v317 = vld [vmem:[#allocation2 + $0x18] sm:$0xff]
    %v318 = vld [vmem:[#allocation2 + $0x20] sm:$0xff]
    %v319 = vld [vmem:[#allocation2 + $0x28] sm:$0xff]
    %v320 = vld [vmem:[#allocation2 + $0x30] sm:$0xff]
    %v321 = vld [vmem:[#allocation2 + $0x38] sm:$0xff]
    %v322 = vld [vmem:[#allocation2 + $0x40] sm:$0xff]
    %v323 = vld [vmem:[#allocation2 + $0x48] sm:$0xff]
    %v324 = vld [vmem:[#allocation2 + $0x50] sm:$0xff]
    %v325 = vld [vmem:[#allocation2 + $0x58] sm:$0xff]
    %v326 = vld [vmem:[#allocation2 + $0x60] sm:$0xff]
    %v327 = vld [vmem:[#allocation2 + $0x68] sm:$0xff]
    %v328 = vld [vmem:[#allocation2 + $0x70] sm:$0xff]
    %v329 = vld [vmem:[#allocation2 + $0x78] sm:$0xff]
    %v330 = vld [vmem:[%s2] sm:$0x1]
    %v332 = vlaneseq
    %v333 = vshrl.u32 %v332, 7
    %v334 = vsub.s32 0, %v333
    %v335 = vrot.slane %v330, %v334
    %v337 = vadd.f32 %v314, %v335
    %v338 = vadd.f32 %v315, %v335
    %v339 = vadd.f32 %v316, %v335
    %v340 = vadd.f32 %v317, %v335
    %v341 = vadd.f32 %v318, %v335
    %v342 = vadd.f32 %v319, %v335
    %v343 = vadd.f32 %v320, %v335
    %v344 = vadd.f32 %v321, %v335
    %v345 = vadd.f32 %v322, %v335
    %v346 = vadd.f32 %v323, %v335
    %v347 = vadd.f32 %v324, %v335
    %v348 = vadd.f32 %v325, %v335
    %v349 = vadd.f32 %v326, %v335
    %v350 = vadd.f32 %v327, %v335
    %v351 = vadd.f32 %v328, %v335
    %v352 = vadd.f32 %v329, %v335
    %vm353 = vcmp.gt.f32.partialorder %v337, 0.0
    %vm354 = vcmp.gt.f32.partialorder %v338, 0.0
    %vm355 = vcmp.gt.f32.partialorder %v339, 0.0
    %vm356 = vcmp.gt.f32.partialorder %v340, 0.0
    %vm357 = vcmp.gt.f32.partialorder %v341, 0.0
    %vm358 = vcmp.gt.f32.partialorder %v342, 0.0
    %vm359 = vcmp.gt.f32.partialorder %v343, 0.0
    %vm360 = vcmp.gt.f32.partialorder %v344, 0.0
    %vm361 = vcmp.gt.f32.partialorder %v345, 0.0
    %vm362 = vcmp.gt.f32.partialorder %v346, 0.0
    %vm363 = vcmp.gt.f32.partialorder %v347, 0.0
    %vm364 = vcmp.gt.f32.partialorder %v348, 0.0
    %vm365 = vcmp.gt.f32.partialorder %v349, 0.0
    %vm366 = vcmp.gt.f32.partialorder %v350, 0.0
    %vm367 = vcmp.gt.f32.partialorder %v351, 0.0
    %vm368 = vcmp.gt.f32.partialorder %v352, 0.0
    %v369 = vld [vmem:[%s3] sm:$0x1]
    %v371 = vlaneseq
    %v372 = vshrl.u32 %v371, 7
    %v373 = vsub.s32 0, %v372
    %v374 = vrot.slane %v369, %v373
    %v376 = vmul.f32 %v374, %v337
    %v377 = vmul.f32 %v374, %v338
    %v378 = vmul.f32 %v374, %v339
    %v379 = vmul.f32 %v374, %v340
    %v380 = vmul.f32 %v374, %v341
    %v381 = vmul.f32 %v374, %v342
    %v382 = vmul.f32 %v374, %v343
    %v383 = vmul.f32 %v374, %v344
    %v384 = vmul.f32 %v374, %v345
    %v385 = vmul.f32 %v374, %v346
    %v386 = vmul.f32 %v374, %v347
    %v387 = vmul.f32 %v374, %v348
    %v388 = vmul.f32 %v374, %v349
    %v389 = vmul.f32 %v374, %v350
    %v390 = vmul.f32 %v374, %v351
    %v391 = vmul.f32 %v374, %v352
    %v392 = vsel %vm353, %v337, %v376
    %v393 = vsel %vm354, %v338, %v377
    %v394 = vsel %vm355, %v339, %v378
    %v395 = vsel %vm356, %v340, %v379
    %v396 = vsel %vm357, %v341, %v380
    %v397 = vsel %vm358, %v342, %v381
    %v398 = vsel %vm359, %v343, %v382
    %v399 = vsel %vm360, %v344, %v383
    %v400 = vsel %vm361, %v345, %v384
    %v401 = vsel %vm362, %v346, %v385
    %v402 = vsel %vm363, %v347, %v386
    %v403 = vsel %vm364, %v348, %v387
    %v404 = vsel %vm365, %v349, %v388
    %v405 = vsel %vm366, %v350, %v389
    %v406 = vsel %vm367, %v351, %v390
    %v407 = vsel %vm368, %v352, %v391
    %408 = vst [vmem:[%s4] sm:$0xff] %v392
    %409 = vst [vmem:[%s4 + $0x8] sm:$0xff] %v393
    %410 = vst [vmem:[%s4 + $0x10] sm:$0xff] %v394
    %411 = vst [vmem:[%s4 + $0x18] sm:$0xff] %v395
    %412 = vst [vmem:[%s4 + $0x20] sm:$0xff] %v396
    %413 = vst [vmem:[%s4 + $0x28] sm:$0xff] %v397
    %414 = vst [vmem:[%s4 + $0x30] sm:$0xff] %v398
    %415 = vst [vmem:[%s4 + $0x38] sm:$0xff] %v399
    %416 = vst [vmem:[%s4 + $0x40] sm:$0xff] %v400
    %417 = vst [vmem:[%s4 + $0x48] sm:$0xff] %v401
    %418 = vst [vmem:[%s4 + $0x50] sm:$0xff] %v402
    %419 = vst [vmem:[%s4 + $0x58] sm:$0xff] %v403
    %420 = vst [vmem:[%s4 + $0x60] sm:$0xff] %v404
    %421 = vst [vmem:[%s4 + $0x68] sm:$0xff] %v405
    %422 = vst [vmem:[%s4 + $0x70] sm:$0xff] %v406
    %423 = vst [vmem:[%s4 + $0x78] sm:$0xff] %v407
  $region25: #{gconv_forward.7} parent=0 // pred_fallthru
    _
  // Predicated region
  $region26: #{gconv_forward.7} parent=0 // pred_check
    _
  $region27: #{gconv_forward.7} parent=0 // pred_check_branch
    %425 = sbr.rel (0) target = $region29
  $region28: #{gconv_forward.7} parent=0 // pred_region
    _
  $region29: #{gconv_forward.7} parent=0 // pred_fallthru
    _
  // Predicated region
  $region30: #{gconv_forward.7} parent=0 // pred_check
    _
  $region31: #{gconv_forward.7} parent=0 // pred_check_branch
    %427 = sbr.rel (0) target = $region33
  $region32: #{gconv_forward.7} parent=0 // pred_region
    _
  $region33: #{gconv_forward.7} parent=0 // pred_fallthru
    _

</llo_original>
